<compile_context>
chip_gen: v6e
topology: v6e:2x2x1
jax: 0.10.0
libtpu: 0.0.40
codegen_flags: <defaults>
</compile_context>

<pallas_src>
import functools

import jax
import jax.numpy as jnp
import numpy as np
from jax import lax
from jax.experimental import pallas as pl
from jax.experimental.pallas import tpu as pltpu


def _softmax_last(s):
    """Numerically-stable softmax over the last axis (f32 in, f32 out)."""
    s = s - jnp.max(s, axis=-1, keepdims=True)
    p = jnp.exp(s)
    # EUP approximate reciprocal instead of a full VALU divide over the scores.
    return p * pl.reciprocal(jnp.sum(p, axis=-1, keepdims=True), approx=True)


def mha_kernel(x_ref, wq_ref, wk_ref, wv_ref, bq_ref, bk_ref, bv_ref,
               wo_ref, bo_ref, o_ref, *, heads, b_tile, seq_len):
    """One batch-block grid step (all heads handled inside the step).

    x_ref          : (b_tile*seq_len, D)  activations, compute dtype (bf16)
    wq/wk/wv_ref   : (D, D)               projection weights (Wq already scaled)
    bq/bk/bv_ref   : (1, D)               projection biases, f32 (bq already scaled)
    wo_ref         : (D, D)               output projection weights
    bo_ref         : (1, D)               output projection bias, f32
    o_ref          : (b_tile*seq_len, D)  output block
    """
    cdt = wq_ref.dtype                    # MXU feed dtype (bf16 in the demo)
    xc = x_ref[...]
    if xc.dtype != cdt:
        xc = xc.astype(cdt)

    # Full-width projections: MXU output width = D (not dh), f32 accumulation.
    q = jnp.dot(xc, wq_ref[...], preferred_element_type=jnp.float32) + bq_ref[...]
    k = jnp.dot(xc, wk_ref[...], preferred_element_type=jnp.float32) + bk_ref[...]
    v = jnp.dot(xc, wv_ref[...], preferred_element_type=jnp.float32) + bv_ref[...]

    rows, D = xc.shape[0], wq_ref.shape[1]
    dh = D // heads
    wo = wo_ref[...]
    out = jnp.zeros((rows, D), jnp.float32)

    # Static per-head loop (heads is small); columns [h*dh:(h+1)*dh] are head h,
    # exactly matching rearrange('b n (h d) -> b h n d') in the PyTorch module.
    for h in range(heads):
        sl = slice(h * dh, (h + 1) * dh)
        qh = q[:, sl].astype(cdt)
        kh = k[:, sl].astype(cdt)
        vh = v[:, sl].astype(cdt)
        if b_tile == 1:
            # Contract dh of both operands directly (no materialized transpose).
            s = lax.dot_general(qh, kh, (((1,), (1,)), ((), ())),
                                preferred_element_type=jnp.float32)          # (N, N)
            p = _softmax_last(s)
            ctx = jnp.dot(p.astype(cdt), vh,
                          preferred_element_type=jnp.float32)                # (N, dh)
        else:
            # Folded batch path (only used when seq_len % 8 == 0, see _pick_b_tile).
            q3 = qh.reshape(b_tile, seq_len, dh)
            k3 = kh.reshape(b_tile, seq_len, dh)
            v3 = vh.reshape(b_tile, seq_len, dh)
            s = jnp.einsum("bnd,bmd->bnm", q3, k3,
                           preferred_element_type=jnp.float32)               # (bt,N,N)
            p = _softmax_last(s)
            ctx = jnp.einsum("bnm,bmd->bnd", p.astype(cdt), v3,
                             preferred_element_type=jnp.float32)             # (bt,N,dh)
            ctx = ctx.reshape(rows, dh)
        # Fold head h through its row-slice of Wo and accumulate:
        #   sum_h ctx_h @ Wo[h*dh:(h+1)*dh, :] == concat_h(ctx_h) @ Wo
        out = out + jnp.dot(ctx.astype(cdt), wo[sl, :],
                            preferred_element_type=jnp.float32)

    o_ref[...] = (out + bo_ref[...]).astype(o_ref.dtype)


def _pick_b_tile(batch, seq, target_rows=256):
    """Fold batch elems into the matmul M dim (~256 rows), keep >=2 batch blocks."""
    cands = []
    for bt in range(1, batch + 1):
        if batch % bt:
            continue
        rows = bt * seq
        if rows % 8 != 0 and bt != batch:
            continue                      # block rows must be sublane-aligned
        if bt > 1 and seq % 8 != 0 and bt != batch:
            continue                      # avoid sublane-splitting reshapes
        cands.append(bt)
    if not cands:
        return batch
    multi = [bt for bt in cands if batch // bt >= 2]      # keep both v7x TCs busy
    pool = multi if multi else cands
    fit = [bt for bt in pool if bt * seq <= target_rows]
    return max(fit) if fit else min(pool)


def prepare_params(params, heads):
    """One-time host-side repack: split qkv, fold 1/sqrt(dh) into Wq/bq, f32 biases."""
    wqkv, bqkv = params["wqkv"], params["bqkv"]
    wo, bo = params["wo"], params["bo"]
    D = wqkv.shape[0]
    assert D % heads == 0, "embed dim must be divisible by heads"
    scale = float((D / heads) ** (-0.5))
    wdt = wqkv.dtype
    wq = (wqkv[:, 0 * D:1 * D].astype(jnp.float32) * scale).astype(wdt)
    wk = wqkv[:, 1 * D:2 * D].astype(wdt)
    wv = wqkv[:, 2 * D:3 * D].astype(wdt)
    bq = bqkv[:, 0 * D:1 * D].astype(jnp.float32) * scale
    bk = bqkv[:, 1 * D:2 * D].astype(jnp.float32)
    bv = bqkv[:, 2 * D:3 * D].astype(jnp.float32)
    return {"wq": wq, "wk": wk, "wv": wv, "bq": bq, "bk": bk, "bv": bv,
            "wo": wo.astype(wdt), "bo": bo.astype(jnp.float32)}


def _vmem_limit_bytes(rows, D, w_bytes, out_bytes):
    """Only request an explicit scoped-VMEM budget when the default is too small."""
    weights = 4 * D * D * w_bytes + 4 * D * 4
    io = 2 * rows * D * (w_bytes + out_bytes)             # double-buffered x + out
    interm = 6 * rows * D * 4                             # q/k/v f32 + live head tiles
    est = weights + io + interm
    if est <= 12 * 1024 * 1024:
        return None
    return min(int(est * 1.5), 48 * 1024 * 1024)          # stay under v7x's 64 MiB


def _mha_pallas(x, pp, heads, b_tile):
    B, N, D = x.shape
    assert B % b_tile == 0
    rows = b_tile * N
    cdt = pp["wq"].dtype
    x2 = x.reshape(B * N, D).astype(cdt)                  # bf16 feed: half the x DMA

    def resident(shape):                                  # VMEM-resident weight block
        return pl.BlockSpec(shape, lambda i: (0, 0))

    cp_kwargs = {"dimension_semantics": ("parallel",)}
    vlim = _vmem_limit_bytes(rows, D, jnp.dtype(cdt).itemsize, x.dtype.itemsize)
    if vlim is not None:
        cp_kwargs["vmem_limit_bytes"] = vlim

    kernel = functools.partial(mha_kernel, heads=heads, b_tile=b_tile, seq_len=N)
    out2 = pl.pallas_call(
        kernel,
        out_shape=jax.ShapeDtypeStruct((B * N, D), x.dtype),
        grid=(B // b_tile,),
        in_specs=[
            pl.BlockSpec((rows, D), lambda i: (i, 0)),    # x rows (streamed)
            resident((D, D)), resident((D, D)), resident((D, D)),   # Wq/Wk/Wv
            resident((1, D)), resident((1, D)), resident((1, D)),   # bq/bk/bv
            resident((D, D)),                                        # Wo
            resident((1, D)),                                        # bo
        ],
        out_specs=pl.BlockSpec((rows, D), lambda i: (i, 0)),
        compiler_params=pltpu.CompilerParams(**cp_kwargs),
    )(x2, pp["wq"], pp["wk"], pp["wv"], pp["bq"], pp["bk"], pp["bv"],
      pp["wo"], pp["bo"])
    return out2.reshape(B, N, D)


def mha_attention(x, prepared_params, heads, b_tile=None):
    """Multi-head dot-product attention forward (mask=None, dropout=identity)."""
    # TODO(synk): the optional boolean attention-mask path of the PyTorch module is not implemented.
    B, N, _ = x.shape
    if b_tile is None:
        b_tile = _pick_b_tile(B, N)
    return _mha_pallas(x, prepared_params, heads, b_tile)


def mha_reference(x, params, heads):
    """Pure-JAX reference of the PyTorch forward (mask=None, dropout=identity)."""
    B, N, D = x.shape
    dh = D // heads
    scale = (D / heads) ** (-0.5)
    wqkv = params["wqkv"].astype(jnp.float32)
    wo = params["wo"].astype(jnp.float32)
    qkv = x @ wqkv + params["bqkv"].astype(jnp.float32)
    q, k, v = jnp.split(qkv, 3, axis=-1)

    def split_heads(t):
        return t.reshape(B, N, heads, dh).transpose(0, 2, 1, 3)

    q, k, v = map(split_heads, (q, k, v))
    dots = jnp.einsum("bhid,bhjd->bhij", q, k) * scale
    attn = jax.nn.softmax(dots, axis=-1)
    out = jnp.einsum("bhij,bhjd->bhid", attn, v)
    out = out.transpose(0, 2, 1, 3).reshape(B, N, D)
    return out @ wo + params["bo"].astype(jnp.float32)


def init_params(key, dim, param_dtype=jnp.bfloat16):
    ks = jax.random.split(key, 4)
    s = 0.05
    return {
        # weights in bf16 (MXU native rate); biases kept in f32.
        "wqkv": (s * jax.random.normal(ks[0], (dim, 3 * dim), jnp.float32)).astype(param_dtype),
        "bqkv": s * jax.random.normal(ks[1], (1, 3 * dim), jnp.float32),
        "wo":   (s * jax.random.normal(ks[2], (dim, dim), jnp.float32)).astype(param_dtype),
        "bo":   s * jax.random.normal(ks[3], (1, dim), jnp.float32),
    }


if __name__ == "__main__":
    B, N, D, heads = 2, 8, 32, 4     # batch, sequence length, embed dim, heads

    key = jax.random.PRNGKey(0)
    kx, kp = jax.random.split(key)
    x = jax.random.normal(kx, (B, N, D), jnp.float32)
    params = init_params(kp, D)                 # (fixed: no dtype-arg mixup)
    prepped = prepare_params(params, heads)     # one-time host-side repack

    out = mha_attention(x, prepped, heads)
    out = jax.block_until_ready(out)

    ref = mha_reference(x, params, heads)
    np.testing.assert_allclose(np.asarray(out, np.float32),
                               np.asarray(ref, np.float32),
                               rtol=3e-2, atol=5e-3)

    print("KERNEL_OK")
</pallas_src>

<mosaic_0001>
module attributes {stable_mosaic.version = 11 : i64} {
  func.func @mha_kernel(%arg0: i32, %arg1: memref<8x32xbf16, #tpu.memory_space<vmem>>, %arg2: memref<32x32xbf16, #tpu.memory_space<vmem>>, %arg3: memref<32x32xbf16, #tpu.memory_space<vmem>>, %arg4: memref<32x32xbf16, #tpu.memory_space<vmem>>, %arg5: memref<1x32xf32, #tpu.memory_space<vmem>>, %arg6: memref<1x32xf32, #tpu.memory_space<vmem>>, %arg7: memref<1x32xf32, #tpu.memory_space<vmem>>, %arg8: memref<32x32xbf16, #tpu.memory_space<vmem>>, %arg9: memref<1x32xf32, #tpu.memory_space<vmem>>, %arg10: memref<8x32xf32, #tpu.memory_space<vmem>>) attributes {dimension_semantics = [#tpu.dimension_semantics<parallel>], iteration_bounds = array<i64: 2>, scalar_prefetch = 0 : i64, scratch_operands = 0 : i64, tpu.core_type = #tpu.core_type<tc>, window_params = [{transform_indices = @transform_0, window_bounds = array<i64: 8, 32>}, {pipeline_mode = #tpu.pipeline_mode<synchronous>, transform_indices = @transform_1, window_bounds = array<i64: 32, 32>}, {pipeline_mode = #tpu.pipeline_mode<synchronous>, transform_indices = @transform_2, window_bounds = array<i64: 32, 32>}, {pipeline_mode = #tpu.pipeline_mode<synchronous>, transform_indices = @transform_3, window_bounds = array<i64: 32, 32>}, {pipeline_mode = #tpu.pipeline_mode<synchronous>, transform_indices = @transform_4, window_bounds = array<i64: 1, 32>}, {pipeline_mode = #tpu.pipeline_mode<synchronous>, transform_indices = @transform_5, window_bounds = array<i64: 1, 32>}, {pipeline_mode = #tpu.pipeline_mode<synchronous>, transform_indices = @transform_6, window_bounds = array<i64: 1, 32>}, {pipeline_mode = #tpu.pipeline_mode<synchronous>, transform_indices = @transform_7, window_bounds = array<i64: 32, 32>}, {pipeline_mode = #tpu.pipeline_mode<synchronous>, transform_indices = @transform_8, window_bounds = array<i64: 1, 32>}, {transform_indices = @transform_9, window_bounds = array<i64: 8, 32>}]} {
    %c0 = arith.constant 0 : index
    %c0_0 = arith.constant 0 : index
    %0 = vector.load %arg1[%c0, %c0_0] : memref<8x32xbf16, #tpu.memory_space<vmem>>, vector<8x32xbf16>
    %c0_1 = arith.constant 0 : index
    %c0_2 = arith.constant 0 : index
    %1 = vector.load %arg2[%c0_1, %c0_2] : memref<32x32xbf16, #tpu.memory_space<vmem>>, vector<32x32xbf16>
    %cst = arith.constant dense<0.000000e+00> : vector<8x32xf32>
    %2 = tpu.matmul %0, %1, %cst {dimension_numbers = #tpu.dot_dimension_numbers<[1], [0], [0], [1], [0, 0, 1, 1], [], []>} : vector<8x32xbf16>, vector<32x32xbf16>, vector<8x32xf32> -> vector<8x32xf32>
    %c0_3 = arith.constant 0 : index
    %c0_4 = arith.constant 0 : index
    %3 = vector.load %arg5[%c0_3, %c0_4] : memref<1x32xf32, #tpu.memory_space<vmem>>, vector<1x32xf32>
    %4 = vector.broadcast %3 : vector<1x32xf32> to vector<8x32xf32>
    %5 = arith.addf %2, %4 : vector<8x32xf32>
    %c0_5 = arith.constant 0 : index
    %c0_6 = arith.constant 0 : index
    %6 = vector.load %arg3[%c0_5, %c0_6] : memref<32x32xbf16, #tpu.memory_space<vmem>>, vector<32x32xbf16>
    %cst_7 = arith.constant dense<0.000000e+00> : vector<8x32xf32>
    %7 = tpu.matmul %0, %6, %cst_7 {dimension_numbers = #tpu.dot_dimension_numbers<[1], [0], [0], [1], [0, 0, 1, 1], [], []>} : vector<8x32xbf16>, vector<32x32xbf16>, vector<8x32xf32> -> vector<8x32xf32>
    %c0_8 = arith.constant 0 : index
    %c0_9 = arith.constant 0 : index
    %8 = vector.load %arg6[%c0_8, %c0_9] : memref<1x32xf32, #tpu.memory_space<vmem>>, vector<1x32xf32>
    %9 = vector.broadcast %8 : vector<1x32xf32> to vector<8x32xf32>
    %10 = arith.addf %7, %9 : vector<8x32xf32>
    %c0_10 = arith.constant 0 : index
    %c0_11 = arith.constant 0 : index
    %11 = vector.load %arg4[%c0_10, %c0_11] : memref<32x32xbf16, #tpu.memory_space<vmem>>, vector<32x32xbf16>
    %cst_12 = arith.constant dense<0.000000e+00> : vector<8x32xf32>
    %12 = tpu.matmul %0, %11, %cst_12 {dimension_numbers = #tpu.dot_dimension_numbers<[1], [0], [0], [1], [0, 0, 1, 1], [], []>} : vector<8x32xbf16>, vector<32x32xbf16>, vector<8x32xf32> -> vector<8x32xf32>
    %c0_13 = arith.constant 0 : index
    %c0_14 = arith.constant 0 : index
    %13 = vector.load %arg7[%c0_13, %c0_14] : memref<1x32xf32, #tpu.memory_space<vmem>>, vector<1x32xf32>
    %14 = vector.broadcast %13 : vector<1x32xf32> to vector<8x32xf32>
    %15 = arith.addf %12, %14 : vector<8x32xf32>
    %c0_15 = arith.constant 0 : index
    %c0_16 = arith.constant 0 : index
    %16 = vector.load %arg8[%c0_15, %c0_16] : memref<32x32xbf16, #tpu.memory_space<vmem>>, vector<32x32xbf16>
    %cst_17 = arith.constant 0.000000e+00 : f32
    %17 = vector.broadcast %cst_17 : f32 to vector<8x32xf32>
    %18 = vector.extract_strided_slice %5 {offsets = [0, 0], sizes = [8, 8], strides = [1, 1]} : vector<8x32xf32> to vector<8x8xf32>
    %19 = arith.truncf %18 : vector<8x8xf32> to vector<8x8xbf16>
    %20 = vector.extract_strided_slice %10 {offsets = [0, 0], sizes = [8, 8], strides = [1, 1]} : vector<8x32xf32> to vector<8x8xf32>
    %21 = arith.truncf %20 : vector<8x8xf32> to vector<8x8xbf16>
    %22 = vector.extract_strided_slice %15 {offsets = [0, 0], sizes = [8, 8], strides = [1, 1]} : vector<8x32xf32> to vector<8x8xf32>
    %23 = arith.truncf %22 : vector<8x8xf32> to vector<8x8xbf16>
    %cst_18 = arith.constant dense<0.000000e+00> : vector<8x8xf32>
    %24 = tpu.matmul %19, %21, %cst_18 {dimension_numbers = #tpu.dot_dimension_numbers<[1], [1], [0], [0], [0, 0, 1, 0], [], []>} : vector<8x8xbf16>, vector<8x8xbf16>, vector<8x8xf32> -> vector<8x8xf32>
    %cst_19 = arith.constant dense<0xFF800000> : vector<8xf32>
    %25 = vector.multi_reduction <maximumf>, %24, %cst_19 [1] : vector<8x8xf32> to vector<8xf32>
    %26 = vector.shape_cast %25 : vector<8xf32> to vector<8x1xf32>
    %27 = vector.broadcast %26 : vector<8x1xf32> to vector<8x8xf32>
    %28 = arith.subf %24, %27 : vector<8x8xf32>
    %29 = math.exp %28 : vector<8x8xf32>
    %cst_20 = arith.constant dense<0.000000e+00> : vector<8xf32>
    %30 = vector.multi_reduction <add>, %29, %cst_20 [1] : vector<8x8xf32> to vector<8xf32>
    %31 = vector.shape_cast %30 : vector<8xf32> to vector<8x1xf32>
    %32 = tpu.reciprocal %31 {approx = true} : vector<8x1xf32> -> vector<8x1xf32>
    %33 = vector.broadcast %32 : vector<8x1xf32> to vector<8x8xf32>
    %34 = arith.mulf %29, %33 : vector<8x8xf32>
    %35 = arith.truncf %34 : vector<8x8xf32> to vector<8x8xbf16>
    %cst_21 = arith.constant dense<0.000000e+00> : vector<8x8xf32>
    %36 = tpu.matmul %35, %23, %cst_21 {dimension_numbers = #tpu.dot_dimension_numbers<[1], [0], [0], [1], [0, 0, 1, 1], [], []>} : vector<8x8xbf16>, vector<8x8xbf16>, vector<8x8xf32> -> vector<8x8xf32>
    %37 = arith.truncf %36 : vector<8x8xf32> to vector<8x8xbf16>
    %38 = vector.extract_strided_slice %16 {offsets = [0, 0], sizes = [8, 32], strides = [1, 1]} : vector<32x32xbf16> to vector<8x32xbf16>
    %cst_22 = arith.constant dense<0.000000e+00> : vector<8x32xf32>
    %39 = tpu.matmul %37, %38, %cst_22 {dimension_numbers = #tpu.dot_dimension_numbers<[1], [0], [0], [1], [0, 0, 1, 1], [], []>} : vector<8x8xbf16>, vector<8x32xbf16>, vector<8x32xf32> -> vector<8x32xf32>
    %40 = arith.addf %17, %39 : vector<8x32xf32>
    %41 = vector.extract_strided_slice %5 {offsets = [0, 8], sizes = [8, 8], strides = [1, 1]} : vector<8x32xf32> to vector<8x8xf32>
    %42 = arith.truncf %41 : vector<8x8xf32> to vector<8x8xbf16>
    %43 = vector.extract_strided_slice %10 {offsets = [0, 8], sizes = [8, 8], strides = [1, 1]} : vector<8x32xf32> to vector<8x8xf32>
    %44 = arith.truncf %43 : vector<8x8xf32> to vector<8x8xbf16>
    %45 = vector.extract_strided_slice %15 {offsets = [0, 8], sizes = [8, 8], strides = [1, 1]} : vector<8x32xf32> to vector<8x8xf32>
    %46 = arith.truncf %45 : vector<8x8xf32> to vector<8x8xbf16>
    %cst_23 = arith.constant dense<0.000000e+00> : vector<8x8xf32>
    %47 = tpu.matmul %42, %44, %cst_23 {dimension_numbers = #tpu.dot_dimension_numbers<[1], [1], [0], [0], [0, 0, 1, 0], [], []>} : vector<8x8xbf16>, vector<8x8xbf16>, vector<8x8xf32> -> vector<8x8xf32>
    %cst_24 = arith.constant dense<0xFF800000> : vector<8xf32>
    %48 = vector.multi_reduction <maximumf>, %47, %cst_24 [1] : vector<8x8xf32> to vector<8xf32>
    %49 = vector.shape_cast %48 : vector<8xf32> to vector<8x1xf32>
    %50 = vector.broadcast %49 : vector<8x1xf32> to vector<8x8xf32>
    %51 = arith.subf %47, %50 : vector<8x8xf32>
    %52 = math.exp %51 : vector<8x8xf32>
    %cst_25 = arith.constant dense<0.000000e+00> : vector<8xf32>
    %53 = vector.multi_reduction <add>, %52, %cst_25 [1] : vector<8x8xf32> to vector<8xf32>
    %54 = vector.shape_cast %53 : vector<8xf32> to vector<8x1xf32>
    %55 = tpu.reciprocal %54 {approx = true} : vector<8x1xf32> -> vector<8x1xf32>
    %56 = vector.broadcast %55 : vector<8x1xf32> to vector<8x8xf32>
    %57 = arith.mulf %52, %56 : vector<8x8xf32>
    %58 = arith.truncf %57 : vector<8x8xf32> to vector<8x8xbf16>
    %cst_26 = arith.constant dense<0.000000e+00> : vector<8x8xf32>
    %59 = tpu.matmul %58, %46, %cst_26 {dimension_numbers = #tpu.dot_dimension_numbers<[1], [0], [0], [1], [0, 0, 1, 1], [], []>} : vector<8x8xbf16>, vector<8x8xbf16>, vector<8x8xf32> -> vector<8x8xf32>
    %60 = arith.truncf %59 : vector<8x8xf32> to vector<8x8xbf16>
    %61 = vector.extract_strided_slice %16 {offsets = [8, 0], sizes = [8, 32], strides = [1, 1]} : vector<32x32xbf16> to vector<8x32xbf16>
    %cst_27 = arith.constant dense<0.000000e+00> : vector<8x32xf32>
    %62 = tpu.matmul %60, %61, %cst_27 {dimension_numbers = #tpu.dot_dimension_numbers<[1], [0], [0], [1], [0, 0, 1, 1], [], []>} : vector<8x8xbf16>, vector<8x32xbf16>, vector<8x32xf32> -> vector<8x32xf32>
    %63 = arith.addf %40, %62 : vector<8x32xf32>
    %64 = vector.extract_strided_slice %5 {offsets = [0, 16], sizes = [8, 8], strides = [1, 1]} : vector<8x32xf32> to vector<8x8xf32>
    %65 = arith.truncf %64 : vector<8x8xf32> to vector<8x8xbf16>
    %66 = vector.extract_strided_slice %10 {offsets = [0, 16], sizes = [8, 8], strides = [1, 1]} : vector<8x32xf32> to vector<8x8xf32>
    %67 = arith.truncf %66 : vector<8x8xf32> to vector<8x8xbf16>
    %68 = vector.extract_strided_slice %15 {offsets = [0, 16], sizes = [8, 8], strides = [1, 1]} : vector<8x32xf32> to vector<8x8xf32>
    %69 = arith.truncf %68 : vector<8x8xf32> to vector<8x8xbf16>
    %cst_28 = arith.constant dense<0.000000e+00> : vector<8x8xf32>
    %70 = tpu.matmul %65, %67, %cst_28 {dimension_numbers = #tpu.dot_dimension_numbers<[1], [1], [0], [0], [0, 0, 1, 0], [], []>} : vector<8x8xbf16>, vector<8x8xbf16>, vector<8x8xf32> -> vector<8x8xf32>
    %cst_29 = arith.constant dense<0xFF800000> : vector<8xf32>
    %71 = vector.multi_reduction <maximumf>, %70, %cst_29 [1] : vector<8x8xf32> to vector<8xf32>
    %72 = vector.shape_cast %71 : vector<8xf32> to vector<8x1xf32>
    %73 = vector.broadcast %72 : vector<8x1xf32> to vector<8x8xf32>
    %74 = arith.subf %70, %73 : vector<8x8xf32>
    %75 = math.exp %74 : vector<8x8xf32>
    %cst_30 = arith.constant dense<0.000000e+00> : vector<8xf32>
    %76 = vector.multi_reduction <add>, %75, %cst_30 [1] : vector<8x8xf32> to vector<8xf32>
    %77 = vector.shape_cast %76 : vector<8xf32> to vector<8x1xf32>
    %78 = tpu.reciprocal %77 {approx = true} : vector<8x1xf32> -> vector<8x1xf32>
    %79 = vector.broadcast %78 : vector<8x1xf32> to vector<8x8xf32>
    %80 = arith.mulf %75, %79 : vector<8x8xf32>
    %81 = arith.truncf %80 : vector<8x8xf32> to vector<8x8xbf16>
    %cst_31 = arith.constant dense<0.000000e+00> : vector<8x8xf32>
    %82 = tpu.matmul %81, %69, %cst_31 {dimension_numbers = #tpu.dot_dimension_numbers<[1], [0], [0], [1], [0, 0, 1, 1], [], []>} : vector<8x8xbf16>, vector<8x8xbf16>, vector<8x8xf32> -> vector<8x8xf32>
    %83 = arith.truncf %82 : vector<8x8xf32> to vector<8x8xbf16>
    %84 = vector.extract_strided_slice %16 {offsets = [16, 0], sizes = [8, 32], strides = [1, 1]} : vector<32x32xbf16> to vector<8x32xbf16>
    %cst_32 = arith.constant dense<0.000000e+00> : vector<8x32xf32>
    %85 = tpu.matmul %83, %84, %cst_32 {dimension_numbers = #tpu.dot_dimension_numbers<[1], [0], [0], [1], [0, 0, 1, 1], [], []>} : vector<8x8xbf16>, vector<8x32xbf16>, vector<8x32xf32> -> vector<8x32xf32>
    %86 = arith.addf %63, %85 : vector<8x32xf32>
    %87 = vector.extract_strided_slice %5 {offsets = [0, 24], sizes = [8, 8], strides = [1, 1]} : vector<8x32xf32> to vector<8x8xf32>
    %88 = arith.truncf %87 : vector<8x8xf32> to vector<8x8xbf16>
    %89 = vector.extract_strided_slice %10 {offsets = [0, 24], sizes = [8, 8], strides = [1, 1]} : vector<8x32xf32> to vector<8x8xf32>
    %90 = arith.truncf %89 : vector<8x8xf32> to vector<8x8xbf16>
    %91 = vector.extract_strided_slice %15 {offsets = [0, 24], sizes = [8, 8], strides = [1, 1]} : vector<8x32xf32> to vector<8x8xf32>
    %92 = arith.truncf %91 : vector<8x8xf32> to vector<8x8xbf16>
    %cst_33 = arith.constant dense<0.000000e+00> : vector<8x8xf32>
    %93 = tpu.matmul %88, %90, %cst_33 {dimension_numbers = #tpu.dot_dimension_numbers<[1], [1], [0], [0], [0, 0, 1, 0], [], []>} : vector<8x8xbf16>, vector<8x8xbf16>, vector<8x8xf32> -> vector<8x8xf32>
    %cst_34 = arith.constant dense<0xFF800000> : vector<8xf32>
    %94 = vector.multi_reduction <maximumf>, %93, %cst_34 [1] : vector<8x8xf32> to vector<8xf32>
    %95 = vector.shape_cast %94 : vector<8xf32> to vector<8x1xf32>
    %96 = vector.broadcast %95 : vector<8x1xf32> to vector<8x8xf32>
    %97 = arith.subf %93, %96 : vector<8x8xf32>
    %98 = math.exp %97 : vector<8x8xf32>
    %cst_35 = arith.constant dense<0.000000e+00> : vector<8xf32>
    %99 = vector.multi_reduction <add>, %98, %cst_35 [1] : vector<8x8xf32> to vector<8xf32>
    %100 = vector.shape_cast %99 : vector<8xf32> to vector<8x1xf32>
    %101 = tpu.reciprocal %100 {approx = true} : vector<8x1xf32> -> vector<8x1xf32>
    %102 = vector.broadcast %101 : vector<8x1xf32> to vector<8x8xf32>
    %103 = arith.mulf %98, %102 : vector<8x8xf32>
    %104 = arith.truncf %103 : vector<8x8xf32> to vector<8x8xbf16>
    %cst_36 = arith.constant dense<0.000000e+00> : vector<8x8xf32>
    %105 = tpu.matmul %104, %92, %cst_36 {dimension_numbers = #tpu.dot_dimension_numbers<[1], [0], [0], [1], [0, 0, 1, 1], [], []>} : vector<8x8xbf16>, vector<8x8xbf16>, vector<8x8xf32> -> vector<8x8xf32>
    %106 = arith.truncf %105 : vector<8x8xf32> to vector<8x8xbf16>
    %107 = vector.extract_strided_slice %16 {offsets = [24, 0], sizes = [8, 32], strides = [1, 1]} : vector<32x32xbf16> to vector<8x32xbf16>
    %cst_37 = arith.constant dense<0.000000e+00> : vector<8x32xf32>
    %108 = tpu.matmul %106, %107, %cst_37 {dimension_numbers = #tpu.dot_dimension_numbers<[1], [0], [0], [1], [0, 0, 1, 1], [], []>} : vector<8x8xbf16>, vector<8x32xbf16>, vector<8x32xf32> -> vector<8x32xf32>
    %109 = arith.addf %86, %108 : vector<8x32xf32>
    %c0_38 = arith.constant 0 : index
    %c0_39 = arith.constant 0 : index
    %110 = vector.load %arg9[%c0_38, %c0_39] : memref<1x32xf32, #tpu.memory_space<vmem>>, vector<1x32xf32>
    %111 = vector.broadcast %110 : vector<1x32xf32> to vector<8x32xf32>
    %112 = arith.addf %109, %111 : vector<8x32xf32>
    %c0_40 = arith.constant 0 : index
    %c0_41 = arith.constant 0 : index
    %113 = vector.load %arg10[%c0_40, %c0_41] : memref<8x32xf32, #tpu.memory_space<vmem>>, vector<8x32xf32>
    tpu.vector_store %arg10[%c0_40, %c0_41], %112 {strides = array<i32>} : memref<8x32xf32, #tpu.memory_space<vmem>>, vector<8x32xf32>,
    return
  }
  func.func @transform_0(%arg0: i32) -> (i32, i32) {
    %c0_i32 = arith.constant 0 : i32
    %c0_i32_0 = arith.constant 0 : i32
    return %arg0, %c0_i32 : i32, i32
  }
  func.func @transform_1(%arg0: i32) -> (i32, i32) {
    %c0_i32 = arith.constant 0 : i32
    %c0_i32_0 = arith.constant 0 : i32
    %c0_i32_1 = arith.constant 0 : i32
    return %c0_i32, %c0_i32_0 : i32, i32
  }
  func.func @transform_2(%arg0: i32) -> (i32, i32) {
    %c0_i32 = arith.constant 0 : i32
    %c0_i32_0 = arith.constant 0 : i32
    %c0_i32_1 = arith.constant 0 : i32
    return %c0_i32, %c0_i32_0 : i32, i32
  }
  func.func @transform_3(%arg0: i32) -> (i32, i32) {
    %c0_i32 = arith.constant 0 : i32
    %c0_i32_0 = arith.constant 0 : i32
    %c0_i32_1 = arith.constant 0 : i32
    return %c0_i32, %c0_i32_0 : i32, i32
  }
  func.func @transform_4(%arg0: i32) -> (i32, i32) {
    %c0_i32 = arith.constant 0 : i32
    %c0_i32_0 = arith.constant 0 : i32
    %c0_i32_1 = arith.constant 0 : i32
    return %c0_i32, %c0_i32_0 : i32, i32
  }
  func.func @transform_5(%arg0: i32) -> (i32, i32) {
    %c0_i32 = arith.constant 0 : i32
    %c0_i32_0 = arith.constant 0 : i32
    %c0_i32_1 = arith.constant 0 : i32
    return %c0_i32, %c0_i32_0 : i32, i32
  }
  func.func @transform_6(%arg0: i32) -> (i32, i32) {
    %c0_i32 = arith.constant 0 : i32
    %c0_i32_0 = arith.constant 0 : i32
    %c0_i32_1 = arith.constant 0 : i32
    return %c0_i32, %c0_i32_0 : i32, i32
  }
  func.func @transform_7(%arg0: i32) -> (i32, i32) {
    %c0_i32 = arith.constant 0 : i32
    %c0_i32_0 = arith.constant 0 : i32
    %c0_i32_1 = arith.constant 0 : i32
    return %c0_i32, %c0_i32_0 : i32, i32
  }
  func.func @transform_8(%arg0: i32) -> (i32, i32) {
    %c0_i32 = arith.constant 0 : i32
    %c0_i32_0 = arith.constant 0 : i32
    %c0_i32_1 = arith.constant 0 : i32
    return %c0_i32, %c0_i32_0 : i32, i32
  }
  func.func @transform_9(%arg0: i32) -> (i32, i32) {
    %c0_i32 = arith.constant 0 : i32
    %c0_i32_0 = arith.constant 0 : i32
    return %arg0, %c0_i32 : i32, i32
  }
}

</mosaic_0001>

<llo_original>
// kernel: tpu_custom_call.1
$region0: #{tpu_custom_call.1}
  #allocation0 [shape = 'u32[]', space=smem, size = 0x4, offset = 0x4, fixed_abs, tag = 'smem constant byte address 0x4 - core index']
  #allocation1 [shape = 'u32[144,128]{1,0:T(1,128)}', space=vmem, size = 0x12000, scoped, tag = 'internal scratch']
  %s0 = inlined_call_operand.hbm [shape: bf16[16,32], index: 0, kind: input, shape index: {}]
  %s1 = inlined_call_operand.hbm [shape: bf16[32,32], index: 1, kind: input, shape index: {}]
  %s2 = inlined_call_operand.hbm [shape: bf16[32,32], index: 2, kind: input, shape index: {}]
  %s3 = inlined_call_operand.hbm [shape: bf16[32,32], index: 3, kind: input, shape index: {}]
  %s4 = inlined_call_operand.vmem [shape: f32[1,32], index: 4, kind: input, shape index: {}]
  %s5 = inlined_call_operand.vmem [shape: f32[1,32], index: 5, kind: input, shape index: {}]
  %s6 = inlined_call_operand.vmem [shape: f32[1,32], index: 6, kind: input, shape index: {}]
  %s7 = inlined_call_operand.hbm [shape: bf16[32,32], index: 7, kind: input, shape index: {}]
  %s8 = inlined_call_operand.vmem [shape: f32[1,32], index: 8, kind: input, shape index: {}]
  %s9 = inlined_call_operand.hbm [shape: f32[16,32], index: 9, kind: output, shape index: {}]
  %s10 = sld [smem:[#allocation0]]
  $region89: #{tpu_custom_call.1} parent=0
    _
  %s12 = ssub.s32 1, %s10
  %s13 = scalar_select 0, %s12, %s10
  $region1: #{tpu_custom_call.1} parent=0
    #allocation2 [shape = 'u8[4096]{0}', space=vmem, size = 0x1000, scoped, tag = 'input window, operand 0']
    #allocation3 [shape = 's32[2]{0}', space=sflag, size = 0x8, scoped, tag = 'scoped memory for tpu_custom_call.1']
    #allocation4 [shape = 's32[2]{0}', space=sflag, size = 0x8, scoped, tag = 'scoped memory for tpu_custom_call.1']
    #allocation5 [shape = 'u8[8192]{0}', space=vmem, size = 0x2000, scoped, tag = 'input window, operand 1, single buffered']
    #allocation6 [shape = 's32[1]{0}', space=sflag, size = 0x4, scoped, tag = 'scoped memory for tpu_custom_call.1']
    #allocation7 [shape = 'u8[8192]{0}', space=vmem, size = 0x2000, scoped, tag = 'input window, operand 2, single buffered']
    #allocation8 [shape = 'u8[8192]{0}', space=vmem, size = 0x2000, scoped, tag = 'input window, operand 3, single buffered']
    #allocation9 [shape = 's32[1]{0}', space=sflag, size = 0x4, scoped, tag = 'scoped memory for tpu_custom_call.1']
    #allocation10 [shape = 'u8[8192]{0}', space=vmem, size = 0x2000, scoped, tag = 'input window, operand 7, single buffered']
    #allocation11 [shape = 'u8[8192]{0}', space=vmem, size = 0x2000, scoped, tag = 'output window, operand 0']
    %14 = vsyncpa [#allocation3], 0
    %s15 = scalar_lea.sflag [#allocation3], 1
    %16 = vsyncpa %s15, 0
    %17 = vsyncpa [#allocation6], 0
    %18 = vsyncpa [#allocation9], 0
    %19 = vsyncpa [#allocation4], 0
    %s20 = scalar_lea.sflag [#allocation4], 1
    %21 = vsyncpa %s20, 0
    loop: start=0, step=1, limit=4
    $region2: #{tpu_custom_call.1} parent=1 // loop_pre_header
      _
    $region3: #{tpu_custom_call.1} parent=1 // loop_header
      %s23 = sphi 0, %s27
      %p24 = scmp.ge.s32.totalorder %s23, 4
      %s33 = sphi 0, %s35
      %s36 = sphi 0, %s33
      %s37 = sphi 0, %s36
      %s53 = sphi 0, %s37
      %s57 = sphi 0, %s57
      %s59 = sphi 0, %s57
      %s60 = sphi 0, %s59
      %s74 = sphi 0, %s60
      %s78 = sphi 0, %s78
      %s80 = sphi 0, %s78
      %s81 = sphi 0, %s80
      %s95 = sphi 0, %s81
      %s99 = sphi 0, %s99
      %s101 = sphi 0, %s99
      %s102 = sphi 0, %s101
      %s116 = sphi 0, %s102
      %s120 = sphi 0, %s120
      %s122 = sphi 0, %s120
      %s123 = sphi 0, %s122
      %s137 = sphi 0, %s123
      %s141 = sphi 0, %s141
      %s143 = sphi 0, %s141
      %s144 = sphi 0, %s143
      %s158 = sphi 0, %s144
      %s162 = sphi 0, %s162
      %s164 = sphi 0, %s162
      %s165 = sphi 0, %s164
      %s179 = sphi 0, %s165
      %s183 = sphi 0, %s183
      %s185 = sphi 0, %s183
      %s186 = sphi 0, %s185
      %s200 = sphi 0, %s186
      %s204 = sphi 0, %s204
      %s206 = sphi 0, %s204
      %s207 = sphi 0, %s206
      %s221 = sphi 0, %s207
      %s227 = sphi 0, %s229
      %s230 = sphi 0, %s227
      %s231 = sphi 0, %s230
      %s247 = sphi 0, %s231
    $region4: #{tpu_custom_call.1} parent=1 // loop_header_branch
      %26 = sbr.rel (%p24) target = $region8
    $region5: #{tpu_custom_call.1} parent=1 // loop_body
      %s28 = ssub.s32 %s23, 1
      %s29 = ssub.s32 %s23, 2
      %s30 = sadd.s32 %s23, 1
      %s31 = ssub.s32 %s23, %s30
      %p32 = scmp.eq.s32.totalorder %s31, 0
      %s34 = sadd.s32 %s33, 1
      %s35 = scalar_select %p32, %s33, %s34
      %p38 = pneg %p32
      %p39 = scmp.eq.s32.totalorder %s23, 1
      %p40 = por %p38, %p39
      %p41 = scmp.ne.s32.totalorder %s33, %s36
      %p42 = scmp.eq.s32.totalorder %s23, 0
      %p43 = por %p41, %p42
      %p44 = scmp.ne.s32.totalorder %s33, %s36
      %p45 = scmp.eq.s32.totalorder %s28, 1
      %p46 = por %p44, %p45
      %p47 = scmp.ne.s32.totalorder %s36, %s37
      %p48 = scmp.eq.s32.totalorder %s28, 0
      %p49 = por %p47, %p48
      %p50 = scmp.ne.s32.totalorder %s36, %s37
      %p51 = scmp.eq.s32.totalorder %s29, 1
      %p52 = por %p50, %p51
      %p54 = scmp.ne.s32.totalorder %s37, %s53
      %p55 = scmp.eq.s32.totalorder %s29, 0
      %p56 = por %p54, %p55
      %s58 = sadd.s32 %s57, 1
      %p61 = scmp.eq.s32.totalorder %s23, 1
      %p62 = scmp.ne.s32.totalorder %s57, %s59
      %p63 = scmp.eq.s32.totalorder %s23, 0
      %p64 = por %p62, %p63
      %p65 = scmp.ne.s32.totalorder %s57, %s59
      %p66 = scmp.eq.s32.totalorder %s28, 1
      %p67 = por %p65, %p66
      %p68 = scmp.ne.s32.totalorder %s59, %s60
      %p69 = scmp.eq.s32.totalorder %s28, 0
      %p70 = por %p68, %p69
      %p71 = scmp.ne.s32.totalorder %s59, %s60
      %p72 = scmp.eq.s32.totalorder %s29, 1
      %p73 = por %p71, %p72
      %p75 = scmp.ne.s32.totalorder %s60, %s74
      %p76 = scmp.eq.s32.totalorder %s29, 0
      %p77 = por %p75, %p76
      %s79 = sadd.s32 %s78, 1
      %p82 = scmp.eq.s32.totalorder %s23, 1
      %p83 = scmp.ne.s32.totalorder %s78, %s80
      %p84 = scmp.eq.s32.totalorder %s23, 0
      %p85 = por %p83, %p84
      %p86 = scmp.ne.s32.totalorder %s78, %s80
      %p87 = scmp.eq.s32.totalorder %s28, 1
      %p88 = por %p86, %p87
      %p89 = scmp.ne.s32.totalorder %s80, %s81
      %p90 = scmp.eq.s32.totalorder %s28, 0
      %p91 = por %p89, %p90
      %p92 = scmp.ne.s32.totalorder %s80, %s81
      %p93 = scmp.eq.s32.totalorder %s29, 1
      %p94 = por %p92, %p93
      %p96 = scmp.ne.s32.totalorder %s81, %s95
      %p97 = scmp.eq.s32.totalorder %s29, 0
      %p98 = por %p96, %p97
      %s100 = sadd.s32 %s99, 1
      %p103 = scmp.eq.s32.totalorder %s23, 1
      %p104 = scmp.ne.s32.totalorder %s99, %s101
      %p105 = scmp.eq.s32.totalorder %s23, 0
      %p106 = por %p104, %p105
      %p107 = scmp.ne.s32.totalorder %s99, %s101
      %p108 = scmp.eq.s32.totalorder %s28, 1
      %p109 = por %p107, %p108
      %p110 = scmp.ne.s32.totalorder %s101, %s102
      %p111 = scmp.eq.s32.totalorder %s28, 0
      %p112 = por %p110, %p111
      %p113 = scmp.ne.s32.totalorder %s101, %s102
      %p114 = scmp.eq.s32.totalorder %s29, 1
      %p115 = por %p113, %p114
      %p117 = scmp.ne.s32.totalorder %s102, %s116
      %p118 = scmp.eq.s32.totalorder %s29, 0
      %p119 = por %p117, %p118
      %s121 = sadd.s32 %s120, 1
      %p124 = scmp.eq.s32.totalorder %s23, 1
      %p125 = scmp.ne.s32.totalorder %s120, %s122
      %p126 = scmp.eq.s32.totalorder %s23, 0
      %p127 = por %p125, %p126
      %p128 = scmp.ne.s32.totalorder %s120, %s122
      %p129 = scmp.eq.s32.totalorder %s28, 1
      %p130 = por %p128, %p129
      %p131 = scmp.ne.s32.totalorder %s122, %s123
      %p132 = scmp.eq.s32.totalorder %s28, 0
      %p133 = por %p131, %p132
      %p134 = scmp.ne.s32.totalorder %s122, %s123
      %p135 = scmp.eq.s32.totalorder %s29, 1
      %p136 = por %p134, %p135
      %p138 = scmp.ne.s32.totalorder %s123, %s137
      %p139 = scmp.eq.s32.totalorder %s29, 0
      %p140 = por %p138, %p139
      %s142 = sadd.s32 %s141, 1
      %p145 = scmp.eq.s32.totalorder %s23, 1
      %p146 = scmp.ne.s32.totalorder %s141, %s143
      %p147 = scmp.eq.s32.totalorder %s23, 0
      %p148 = por %p146, %p147
      %p149 = scmp.ne.s32.totalorder %s141, %s143
      %p150 = scmp.eq.s32.totalorder %s28, 1
      %p151 = por %p149, %p150
      %p152 = scmp.ne.s32.totalorder %s143, %s144
      %p153 = scmp.eq.s32.totalorder %s28, 0
      %p154 = por %p152, %p153
      %p155 = scmp.ne.s32.totalorder %s143, %s144
      %p156 = scmp.eq.s32.totalorder %s29, 1
      %p157 = por %p155, %p156
      %p159 = scmp.ne.s32.totalorder %s144, %s158
      %p160 = scmp.eq.s32.totalorder %s29, 0
      %p161 = por %p159, %p160
      %s163 = sadd.s32 %s162, 1
      %p166 = scmp.eq.s32.totalorder %s23, 1
      %p167 = scmp.ne.s32.totalorder %s162, %s164
      %p168 = scmp.eq.s32.totalorder %s23, 0
      %p169 = por %p167, %p168
      %p170 = scmp.ne.s32.totalorder %s162, %s164
      %p171 = scmp.eq.s32.totalorder %s28, 1
      %p172 = por %p170, %p171
      %p173 = scmp.ne.s32.totalorder %s164, %s165
      %p174 = scmp.eq.s32.totalorder %s28, 0
      %p175 = por %p173, %p174
      %p176 = scmp.ne.s32.totalorder %s164, %s165
      %p177 = scmp.eq.s32.totalorder %s29, 1
      %p178 = por %p176, %p177
      %p180 = scmp.ne.s32.totalorder %s165, %s179
      %p181 = scmp.eq.s32.totalorder %s29, 0
      %p182 = por %p180, %p181
      %s184 = sadd.s32 %s183, 1
      %p187 = scmp.eq.s32.totalorder %s23, 1
      %p188 = scmp.ne.s32.totalorder %s183, %s185
      %p189 = scmp.eq.s32.totalorder %s23, 0
      %p190 = por %p188, %p189
      %p191 = scmp.ne.s32.totalorder %s183, %s185
      %p192 = scmp.eq.s32.totalorder %s28, 1
      %p193 = por %p191, %p192
      %p194 = scmp.ne.s32.totalorder %s185, %s186
      %p195 = scmp.eq.s32.totalorder %s28, 0
      %p196 = por %p194, %p195
      %p197 = scmp.ne.s32.totalorder %s185, %s186
      %p198 = scmp.eq.s32.totalorder %s29, 1
      %p199 = por %p197, %p198
      %p201 = scmp.ne.s32.totalorder %s186, %s200
      %p202 = scmp.eq.s32.totalorder %s29, 0
      %p203 = por %p201, %p202
      %s205 = sadd.s32 %s204, 1
      %p208 = scmp.eq.s32.totalorder %s23, 1
      %p209 = scmp.ne.s32.totalorder %s204, %s206
      %p210 = scmp.eq.s32.totalorder %s23, 0
      %p211 = por %p209, %p210
      %p212 = scmp.ne.s32.totalorder %s204, %s206
      %p213 = scmp.eq.s32.totalorder %s28, 1
      %p214 = por %p212, %p213
      %p215 = scmp.ne.s32.totalorder %s206, %s207
      %p216 = scmp.eq.s32.totalorder %s28, 0
      %p217 = por %p215, %p216
      %p218 = scmp.ne.s32.totalorder %s206, %s207
      %p219 = scmp.eq.s32.totalorder %s29, 1
      %p220 = por %p218, %p219
      %p222 = scmp.ne.s32.totalorder %s207, %s221
      %p223 = scmp.eq.s32.totalorder %s29, 0
      %p224 = por %p222, %p223
      %s225 = ssub.s32 %s23, %s30
      %p226 = scmp.eq.s32.totalorder %s225, 0
      %s228 = sadd.s32 %s227, 1
      %s229 = scalar_select %p226, %s227, %s228
      %p232 = pneg %p226
      %p233 = scmp.eq.s32.totalorder %s23, 1
      %p234 = por %p232, %p233
      %p235 = scmp.ne.s32.totalorder %s227, %s230
      %p236 = scmp.eq.s32.totalorder %s23, 0
      %p237 = por %p235, %p236
      %p238 = scmp.ne.s32.totalorder %s227, %s230
      %p239 = scmp.eq.s32.totalorder %s28, 1
      %p240 = por %p238, %p239
      %p241 = scmp.ne.s32.totalorder %s230, %s231
      %p242 = scmp.eq.s32.totalorder %s28, 0
      %p243 = por %p241, %p242
      %p244 = scmp.ne.s32.totalorder %s230, %s231
      %p245 = scmp.eq.s32.totalorder %s29, 1
      %p246 = por %p244, %p245
      %p248 = scmp.ne.s32.totalorder %s231, %s247
      %p249 = scmp.eq.s32.totalorder %s29, 0
      %p250 = por %p248, %p249
      %p251 = scmp.le.s32.totalorder 1, %s23
      %p252 = scmp.lt.s32.totalorder %s23, 3
      %p253 = pnand %p251, %p252
      %p254 = pneg %p253
      // Predicated region
      $region9: #{tpu_custom_call.1} parent=5 // pred_check
        _
      $region10: #{tpu_custom_call.1} parent=5 // pred_check_branch
        %256 = sbr.rel (%p253) target = $region12
      $region11: #{tpu_custom_call.1} parent=5 // pred_region
        %s257 = ssub.s32 %s23, 1
        // Predicated region
        $region13: #{tpu_custom_call.1} parent=11 // pred_check
          %p258 = pneg %p70
        $region14: #{tpu_custom_call.1} parent=11 // pred_check_branch
          %260 = sbr.rel (%p258) target = $region16
        $region15: #{tpu_custom_call.1} parent=11 // pred_region
          %s262 = ssub.s32 256, 256
          %263 = vsyncadd [#allocation6], %s262
          %s264 = sshll.u32 [#allocation5], 4
          %s265 = int_to_ptr.vmem [resolvable:$true] %s264
          %270 = dma.hbm_to_vmem [thread:$0]  %s1, 256, %s265, [#allocation6], 64, 64, 4
        $region16: #{tpu_custom_call.1} parent=11 // pred_fallthru
          _
        // Predicated region
        $region17: #{tpu_custom_call.1} parent=11 // pred_check
          %p271 = pneg %p91
        $region18: #{tpu_custom_call.1} parent=11 // pred_check_branch
          %273 = sbr.rel (%p271) target = $region20
        $region19: #{tpu_custom_call.1} parent=11 // pred_region
          %s275 = ssub.s32 256, 256
          %276 = vsyncadd [#allocation6], %s275
          %s277 = sshll.u32 [#allocation7], 4
          %s278 = int_to_ptr.vmem [resolvable:$true] %s277
          %283 = dma.hbm_to_vmem [thread:$0]  %s2, 256, %s278, [#allocation6], 64, 64, 4
        $region20: #{tpu_custom_call.1} parent=11 // pred_fallthru
          _
        // Predicated region
        $region21: #{tpu_custom_call.1} parent=11 // pred_check
          %p284 = pneg %p112
        $region22: #{tpu_custom_call.1} parent=11 // pred_check_branch
          %286 = sbr.rel (%p284) target = $region24
        $region23: #{tpu_custom_call.1} parent=11 // pred_region
          %s288 = ssub.s32 256, 256
          %289 = vsyncadd [#allocation9], %s288
          %s290 = sshll.u32 [#allocation8], 4
          %s291 = int_to_ptr.vmem [resolvable:$true] %s290
          %296 = dma.hbm_to_vmem [thread:$0]  %s3, 256, %s291, [#allocation9], 64, 64, 4
        $region24: #{tpu_custom_call.1} parent=11 // pred_fallthru
          _
        // Predicated region
        $region25: #{tpu_custom_call.1} parent=11 // pred_check
          %p297 = pneg %p133
        $region26: #{tpu_custom_call.1} parent=11 // pred_check_branch
          %299 = sbr.rel (%p297) target = $region28
        $region27: #{tpu_custom_call.1} parent=11 // pred_region
          _
        $region28: #{tpu_custom_call.1} parent=11 // pred_fallthru
          _
        // Predicated region
        $region29: #{tpu_custom_call.1} parent=11 // pred_check
          %p300 = pneg %p154
        $region30: #{tpu_custom_call.1} parent=11 // pred_check_branch
          %302 = sbr.rel (%p300) target = $region32
        $region31: #{tpu_custom_call.1} parent=11 // pred_region
          _
        $region32: #{tpu_custom_call.1} parent=11 // pred_fallthru
          _
        // Predicated region
        $region33: #{tpu_custom_call.1} parent=11 // pred_check
          %p303 = pneg %p175
        $region34: #{tpu_custom_call.1} parent=11 // pred_check_branch
          %305 = sbr.rel (%p303) target = $region36
        $region35: #{tpu_custom_call.1} parent=11 // pred_region
          _
        $region36: #{tpu_custom_call.1} parent=11 // pred_fallthru
          _
        // Predicated region
        $region37: #{tpu_custom_call.1} parent=11 // pred_check
          %p306 = pneg %p196
        $region38: #{tpu_custom_call.1} parent=11 // pred_check_branch
          %308 = sbr.rel (%p306) target = $region40
        $region39: #{tpu_custom_call.1} parent=11 // pred_region
          %s310 = ssub.s32 256, 256
          %311 = vsyncadd [#allocation9], %s310
          %s312 = sshll.u32 [#allocation10], 4
          %s313 = int_to_ptr.vmem [resolvable:$true] %s312
          %318 = dma.hbm_to_vmem [thread:$0]  %s7, 256, %s313, [#allocation9], 64, 64, 4
        $region40: #{tpu_custom_call.1} parent=11 // pred_fallthru
          _
        // Predicated region
        $region41: #{tpu_custom_call.1} parent=11 // pred_check
          %p319 = pneg %p217
        $region42: #{tpu_custom_call.1} parent=11 // pred_check_branch
          %321 = sbr.rel (%p319) target = $region44
        $region43: #{tpu_custom_call.1} parent=11 // pred_region
          _
        $region44: #{tpu_custom_call.1} parent=11 // pred_fallthru
          _
      $region12: #{tpu_custom_call.1} parent=5 // pred_fallthru
        _
      %p322 = scmp.lt.s32.totalorder %s23, 2
      // Predicated region
      $region45: #{tpu_custom_call.1} parent=5 // pred_check
        %p323 = pneg %p322
      $region46: #{tpu_custom_call.1} parent=5 // pred_check_branch
        %325 = sbr.rel (%p323) target = $region48
      $region47: #{tpu_custom_call.1} parent=5 // pred_region
        // Predicated region
        $region49: #{tpu_custom_call.1} parent=47 // pred_check
          %p326 = pneg %p43
        $region50: #{tpu_custom_call.1} parent=47 // pred_check_branch
          %328 = sbr.rel (%p326) target = $region52
        $region51: #{tpu_custom_call.1} parent=47 // pred_region
          %s329 = sand.u32 %s33, 1
          %s330 = scalar_lea.sflag [#allocation3], %s329
          %s331 = sand.u32 %s33, 1
          %s332 = smul.addr %s331, 4
          %s333 = scalar_lea.vmem [#allocation2], %s332
          %s335 = ssub.s32 64, 64
          %336 = vsyncadd %s330, %s335
          %s337 = smul.addr %s23, 64
          %s338 = scalar_lea.hbm %s0, %s337
          %s340 = sshll.u32 %s333, 4
          %s341 = int_to_ptr.vmem [resolvable:$true] %s340
          %343 = dma.hbm_to_vmem [thread:$0]  %s338, 64, %s341, %s330
        $region52: #{tpu_custom_call.1} parent=47 // pred_fallthru
          _
      $region48: #{tpu_custom_call.1} parent=5 // pred_fallthru
        _
      %p344 = scmp.le.s32.totalorder 1, %s23
      %p345 = scmp.lt.s32.totalorder %s23, 3
      %p346 = pnand %p344, %p345
      %p347 = pneg %p346
      // Predicated region
      $region53: #{tpu_custom_call.1} parent=5 // pred_check
        _
      $region54: #{tpu_custom_call.1} parent=5 // pred_check_branch
        %349 = sbr.rel (%p346) target = $region56
      $region55: #{tpu_custom_call.1} parent=5 // pred_region
        %s350 = ssub.s32 %s23, 1
        %s351 = sand.u32 %s36, 1
        %s352 = scalar_lea.sflag [#allocation3], %s351
        %s353 = sand.u32 %s36, 1
        %s354 = smul.addr %s353, 4
        %s355 = scalar_lea.vmem [#allocation2], %s354
        // Predicated region
        $region57: #{tpu_custom_call.1} parent=55 // pred_check
          %p356 = pneg %p49
        $region58: #{tpu_custom_call.1} parent=55 // pred_check_branch
          %358 = sbr.rel (%p356) target = $region60
        $region59: #{tpu_custom_call.1} parent=55 // pred_region
          %359 = dma.done %s352, 64
        $region60: #{tpu_custom_call.1} parent=55 // pred_fallthru
          _
        // Predicated region
        $region61: #{tpu_custom_call.1} parent=55 // pred_check
          %p360 = pneg %p70
        $region62: #{tpu_custom_call.1} parent=55 // pred_check_branch
          %362 = sbr.rel (%p360) target = $region64
        $region63: #{tpu_custom_call.1} parent=55 // pred_region
          %363 = dma.done [#allocation6], 256
        $region64: #{tpu_custom_call.1} parent=55 // pred_fallthru
          _
        // Predicated region
        $region65: #{tpu_custom_call.1} parent=55 // pred_check
          %p364 = pneg %p91
        $region66: #{tpu_custom_call.1} parent=55 // pred_check_branch
          %366 = sbr.rel (%p364) target = $region68
        $region67: #{tpu_custom_call.1} parent=55 // pred_region
          %367 = dma.done [#allocation6], 256
        $region68: #{tpu_custom_call.1} parent=55 // pred_fallthru
          _
        // Predicated region
        $region69: #{tpu_custom_call.1} parent=55 // pred_check
          %p368 = pneg %p112
        $region70: #{tpu_custom_call.1} parent=55 // pred_check_branch
          %370 = sbr.rel (%p368) target = $region72
        $region71: #{tpu_custom_call.1} parent=55 // pred_region
          %371 = dma.done [#allocation9], 256
        $region72: #{tpu_custom_call.1} parent=55 // pred_fallthru
          _
        // Predicated region
        $region73: #{tpu_custom_call.1} parent=55 // pred_check
          %p372 = pneg %p196
        $region74: #{tpu_custom_call.1} parent=55 // pred_check_branch
          %374 = sbr.rel (%p372) target = $region76
        $region75: #{tpu_custom_call.1} parent=55 // pred_region
          %375 = dma.done [#allocation9], 256
        $region76: #{tpu_custom_call.1} parent=55 // pred_fallthru
          _
        %s376 = sand.u32 %s36, 1
        %s377 = scalar_lea.sflag [#allocation3], %s376
        %s378 = sand.u32 %s36, 1
        %s379 = smul.addr %s378, 4
        %s380 = scalar_lea.vmem [#allocation2], %s379
        %p381 = pneg %p49
        %p382 = pneg %p46
        %p383 = pneg %p70
        %p384 = pneg %p67
        %p385 = pneg %p91
        %p386 = pneg %p88
        %p387 = pneg %p112
        %p388 = pneg %p109
        %p389 = pneg %p133
        %p390 = pneg %p130
        %p391 = pneg %p154
        %p392 = pneg %p151
        %p393 = pneg %p175
        %p394 = pneg %p172
        %p395 = pneg %p196
        %p396 = pneg %p193
        %p397 = pneg %p217
        %p398 = pneg %p214
        %p399 = pneg %p243
        %p400 = pneg %p240
        %s401 = sand.u32 %s230, 1
        %s402 = scalar_lea.sflag [#allocation4], %s401
        %s403 = sand.u32 %s230, 1
        %s404 = smul.addr %s403, 8
        %s405 = scalar_lea.vmem [#allocation11], %s404
        %v407 = vld [vmem:[%s355] sm:$0xf]
        %v408 = vld [vmem:[#allocation5] sm:$0xf]
        %v409 = vld [vmem:[#allocation5 + $0x4] sm:$0xf]
        %v410 = vld [vmem:[#allocation5 + $0x8] sm:$0xf]
        %v411 = vld [vmem:[#allocation5 + $0xc] sm:$0xf]
        %v412 = vld [vmem:[%s4] sm:$0x1]
        %v414 = vlaneseq
        %v415 = vshrl.u32 %v414, 7
        %v416 = vsub.s32 0, %v415
        %v417 = vrot.slane %v412, %v416
        %v423 = vunpack.c.l.b16 %v408
        %v424 = vunpack.c.l.b16 %v409
        %v425 = vunpack.c.l.b16 %v410
        %v426 = vunpack.c.l.b16 %v411
        %v427 = vpack.c.b16 %v424, %v423
        %v428 = vpack.c.b16 %v426, %v425
        %vm431 = vcmask 261120
        %v433 = vsel %vm431, %v407, 0
        %435 = vmatprep.subr.bf16.mxu0 0
        %436 = vmatpush1.bf16.msra.mxu0 0
        %437 = vmatprep.subr.bf16.mxu0 0
        %438 = vmatpush1.bf16.msra.mxu0 0
        %439 = vmatprep.subr.bf16.mxu0 0
        %440 = vmatpush1.bf16.msra.mxu0 0
        %441 = vmatprep.subr.bf16.mxu0 0
        %442 = vmatpush1.bf16.msra.mxu0 0
        %443 = vmatprep.subr.bf16.mxu0 0
        %444 = vmatpush1.bf16.msra.mxu0 0
        %445 = vmatprep.subr.bf16.mxu0 0
        %446 = vmatpush1.bf16.msra.mxu0 0
        %447 = vmatprep.subr.bf16.mxu0 0
        %448 = vmatpush1.bf16.msra.mxu0 %v428
        %449 = vmatprep.subr.bf16.mxu0 0
        %450 = vmatpush1.bf16.msra.mxu0 %v427
        %451 = vmatprep.subr.bf16.mxu0 0
        %452 = vmatpush2.bf16.msra.mxu0 0
        %453 = vmatprep.subr.bf16.mxu0 0
        %454 = vmatpush2.bf16.msra.mxu0 0
        %455 = vmatprep.subr.bf16.mxu0 0
        %456 = vmatpush2.bf16.msra.mxu0 0
        %457 = vmatprep.subr.bf16.mxu0 0
        %458 = vmatpush2.bf16.msra.mxu0 0
        %459 = vmatprep.subr.bf16.mxu0 0
        %460 = vmatpush2.bf16.msra.mxu0 0
        %461 = vmatprep.subr.bf16.mxu0 0
        %462 = vmatpush2.bf16.msra.mxu0 0
        %463 = vmatprep.subr.bf16.mxu0 0
        %464 = vmatpush2.bf16.msra.mxu0 0
        %465 = vmatprep.subr.bf16.mxu0 0
        %466 = vmatpush2.bf16.msra.mxu0 0
        %467 = vmatprep.mubr.bf16.mxu0 0
        %468 = vmatmul.mubr.bf16.gmra.mxu0 %v433
        %v469 = vpop.f32.mrf.mxu0
        %v470 = vadd.f32 %v417, %v469
        %v471 = vpop.f32.mrf.mxu0
        %v472 = vpop.f32.mrf.mxu0
        %v473 = vpop.f32.mrf.mxu0
        %474 = vdwg.mxu0
        %v475 = vld [vmem:[#allocation7] sm:$0xf]
        %v476 = vld [vmem:[#allocation7 + $0x4] sm:$0xf]
        %v477 = vld [vmem:[#allocation7 + $0x8] sm:$0xf]
        %v478 = vld [vmem:[#allocation7 + $0xc] sm:$0xf]
        %v479 = vld [vmem:[%s5] sm:$0x1]
        %v481 = vlaneseq
        %v482 = vshrl.u32 %v481, 7
        %v483 = vsub.s32 0, %v482
        %v484 = vrot.slane %v479, %v483
        %v490 = vunpack.c.l.b16 %v475
        %v491 = vunpack.c.l.b16 %v476
        %v492 = vunpack.c.l.b16 %v477
        %v493 = vunpack.c.l.b16 %v478
        %v494 = vpack.c.b16 %v491, %v490
        %v495 = vpack.c.b16 %v493, %v492
        %498 = vmatprep.subr.bf16.mxu0 0
        %499 = vmatpush1.bf16.msra.mxu0 0
        %500 = vmatprep.subr.bf16.mxu0 0
        %501 = vmatpush1.bf16.msra.mxu0 0
        %502 = vmatprep.subr.bf16.mxu0 0
        %503 = vmatpush1.bf16.msra.mxu0 0
        %504 = vmatprep.subr.bf16.mxu0 0
        %505 = vmatpush1.bf16.msra.mxu0 0
        %506 = vmatprep.subr.bf16.mxu0 0
        %507 = vmatpush1.bf16.msra.mxu0 0
        %508 = vmatprep.subr.bf16.mxu0 0
        %509 = vmatpush1.bf16.msra.mxu0 0
        %510 = vmatprep.subr.bf16.mxu0 0
        %511 = vmatpush1.bf16.msra.mxu0 %v495
        %512 = vmatprep.subr.bf16.mxu0 0
        %513 = vmatpush1.bf16.msra.mxu0 %v494
        %514 = vmatprep.subr.bf16.mxu0 0
        %515 = vmatpush2.bf16.msra.mxu0 0
        %516 = vmatprep.subr.bf16.mxu0 0
        %517 = vmatpush2.bf16.msra.mxu0 0
        %518 = vmatprep.subr.bf16.mxu0 0
        %519 = vmatpush2.bf16.msra.mxu0 0
        %520 = vmatprep.subr.bf16.mxu0 0
        %521 = vmatpush2.bf16.msra.mxu0 0
        %522 = vmatprep.subr.bf16.mxu0 0
        %523 = vmatpush2.bf16.msra.mxu0 0
        %524 = vmatprep.subr.bf16.mxu0 0
        %525 = vmatpush2.bf16.msra.mxu0 0
        %526 = vmatprep.subr.bf16.mxu0 0
        %527 = vmatpush2.bf16.msra.mxu0 0
        %528 = vmatprep.subr.bf16.mxu0 0
        %529 = vmatpush2.bf16.msra.mxu0 0
        %530 = vmatprep.mubr.bf16.mxu0 0
        %531 = vmatmul.mubr.bf16.gmra.mxu0 %v433
        %v532 = vpop.f32.mrf.mxu0
        %v533 = vadd.f32 %v484, %v532
        %v534 = vpop.f32.mrf.mxu0
        %v535 = vpop.f32.mrf.mxu0
        %v536 = vpop.f32.mrf.mxu0
        %537 = vdwg.mxu0
        %v538 = vld [vmem:[#allocation8] sm:$0xf]
        %v539 = vld [vmem:[#allocation8 + $0x4] sm:$0xf]
        %v540 = vld [vmem:[#allocation8 + $0x8] sm:$0xf]
        %v541 = vld [vmem:[#allocation8 + $0xc] sm:$0xf]
        %v542 = vld [vmem:[%s6] sm:$0x1]
        %v544 = vlaneseq
        %v545 = vshrl.u32 %v544, 7
        %v546 = vsub.s32 0, %v545
        %v547 = vrot.slane %v542, %v546
        %v553 = vunpack.c.l.b16 %v538
        %v554 = vunpack.c.l.b16 %v539
        %v555 = vunpack.c.l.b16 %v540
        %v556 = vunpack.c.l.b16 %v541
        %v557 = vpack.c.b16 %v554, %v553
        %v558 = vpack.c.b16 %v556, %v555
        %561 = vmatprep.subr.bf16.mxu0 0
        %562 = vmatpush1.bf16.msra.mxu0 0
        %563 = vmatprep.subr.bf16.mxu0 0
        %564 = vmatpush1.bf16.msra.mxu0 0
        %565 = vmatprep.subr.bf16.mxu0 0
        %566 = vmatpush1.bf16.msra.mxu0 0
        %567 = vmatprep.subr.bf16.mxu0 0
        %568 = vmatpush1.bf16.msra.mxu0 0
        %569 = vmatprep.subr.bf16.mxu0 0
        %570 = vmatpush1.bf16.msra.mxu0 0
        %571 = vmatprep.subr.bf16.mxu0 0
        %572 = vmatpush1.bf16.msra.mxu0 0
        %573 = vmatprep.subr.bf16.mxu0 0
        %574 = vmatpush1.bf16.msra.mxu0 %v558
        %575 = vmatprep.subr.bf16.mxu0 0
        %576 = vmatpush1.bf16.msra.mxu0 %v557
        %577 = vmatprep.subr.bf16.mxu0 0
        %578 = vmatpush2.bf16.msra.mxu0 0
        %579 = vmatprep.subr.bf16.mxu0 0
        %580 = vmatpush2.bf16.msra.mxu0 0
        %581 = vmatprep.subr.bf16.mxu0 0
        %582 = vmatpush2.bf16.msra.mxu0 0
        %583 = vmatprep.subr.bf16.mxu0 0
        %584 = vmatpush2.bf16.msra.mxu0 0
        %585 = vmatprep.subr.bf16.mxu0 0
        %586 = vmatpush2.bf16.msra.mxu0 0
        %587 = vmatprep.subr.bf16.mxu0 0
        %588 = vmatpush2.bf16.msra.mxu0 0
        %589 = vmatprep.subr.bf16.mxu0 0
        %590 = vmatpush2.bf16.msra.mxu0 0
        %591 = vmatprep.subr.bf16.mxu0 0
        %592 = vmatpush2.bf16.msra.mxu0 0
        %593 = vmatprep.mubr.bf16.mxu0 0
        %594 = vmatmul.mubr.bf16.gmra.mxu0 %v433
        %v595 = vpop.f32.mrf.mxu0
        %v596 = vadd.f32 %v547, %v595
        %v597 = vpop.f32.mrf.mxu0
        %v598 = vpop.f32.mrf.mxu0
        %v599 = vpop.f32.mrf.mxu0
        %600 = vdwg.mxu0
        %v601 = vld [vmem:[#allocation10] sm:$0xf]
        %v602 = vld [vmem:[#allocation10 + $0x4] sm:$0xf]
        %v603 = vld [vmem:[#allocation10 + $0x8] sm:$0xf]
        %v604 = vld [vmem:[#allocation10 + $0xc] sm:$0xf]
        %v605 = vpack.c.bf16 %v470, %v470
        %v606 = vpack.c.bf16 %v533, %v533
        %v607 = vpack.c.bf16 %v596, %v596
        %vm608 = vcmask 64512
        %v610 = vsel %vm608, %v605, 0
        %v613 = vsel %vm608, %v606, 0
        %615 = vmatprep.subr.bf16.mxu0 0
        %616 = vmatpush1.bf16.xpose.msra.mxu0 0
        %617 = vmatprep.subr.bf16.mxu0 0
        %618 = vmatpush1.bf16.xpose.msra.mxu0 0
        %619 = vmatprep.subr.bf16.mxu0 0
        %620 = vmatpush1.bf16.xpose.msra.mxu0 0
        %621 = vmatprep.subr.bf16.mxu0 0
        %622 = vmatpush1.bf16.xpose.msra.mxu0 0
        %623 = vmatprep.subr.bf16.mxu0 0
        %624 = vmatpush1.bf16.xpose.msra.mxu0 0
        %625 = vmatprep.subr.bf16.mxu0 0
        %626 = vmatpush1.bf16.xpose.msra.mxu0 0
        %627 = vmatprep.subr.bf16.mxu0 0
        %628 = vmatpush1.bf16.xpose.msra.mxu0 0
        %629 = vmatprep.subr.bf16.mxu0 0
        %630 = vmatpush1.bf16.xpose.msra.mxu0 %v613
        %631 = vmatprep.subr.bf16.mxu0 0
        %632 = vmatpush2.bf16.xpose.msra.mxu0 0
        %633 = vmatprep.subr.bf16.mxu0 0
        %634 = vmatpush2.bf16.xpose.msra.mxu0 0
        %635 = vmatprep.subr.bf16.mxu0 0
        %636 = vmatpush2.bf16.xpose.msra.mxu0 0
        %637 = vmatprep.subr.bf16.mxu0 0
        %638 = vmatpush2.bf16.xpose.msra.mxu0 0
        %639 = vmatprep.subr.bf16.mxu0 0
        %640 = vmatpush2.bf16.xpose.msra.mxu0 0
        %641 = vmatprep.subr.bf16.mxu0 0
        %642 = vmatpush2.bf16.xpose.msra.mxu0 0
        %643 = vmatprep.subr.bf16.mxu0 0
        %644 = vmatpush2.bf16.xpose.msra.mxu0 0
        %645 = vmatprep.subr.bf16.mxu0 0
        %646 = vmatpush2.bf16.xpose.msra.mxu0 0
        %647 = vmatprep.mubr.bf16.mxu0 0
        %648 = vmatmul.mubr.bf16.gmra.mxu0 %v610
        %v649 = vpop.f32.mrf.mxu0
        %v650 = vadd.f32 0.0, %v649
        %v651 = vpop.f32.mrf.mxu0
        %v652 = vpop.f32.mrf.mxu0
        %v653 = vpop.f32.mrf.mxu0
        %654 = vdwg.mxu0
        %v655 = vsel %vm608, %v650, -inf
        %656 = vmax.xlane.f32.xlu0 %v655
        %v657 = vpop.xlane.xlu0 %656
        %v658 = vsub.f32 %v650, %v657
        %v659 = vmul.f32 %v658, 1.442695
        %v660 = vpow.pop %v659
        %v661 = vsel %vm608, %v660, 0.0
        %662 = vadd.xlane.f32.xlu0 %v661
        %v663 = vpop.xlane.xlu0 %662
        %v664 = vrcp.pop %v663
        %v665 = vmul.f32 %v660, %v664
        %v666 = vpack.c.bf16 %v665, %v665
        %v668 = vsel %vm608, %v666, 0
        %vm670 = vcmask 1043456
        %v672 = vsel %vm670, %v607, 0
        %674 = vmatprep.subr.bf16.mxu0 0
        %675 = vmatpush1.bf16.msra.mxu0 0
        %676 = vmatprep.subr.bf16.mxu0 0
        %677 = vmatpush1.bf16.msra.mxu0 0
        %678 = vmatprep.subr.bf16.mxu0 0
        %679 = vmatpush1.bf16.msra.mxu0 0
        %680 = vmatprep.subr.bf16.mxu0 0
        %681 = vmatpush1.bf16.msra.mxu0 0
        %682 = vmatprep.subr.bf16.mxu0 0
        %683 = vmatpush1.bf16.msra.mxu0 0
        %684 = vmatprep.subr.bf16.mxu0 0
        %685 = vmatpush1.bf16.msra.mxu0 0
        %686 = vmatprep.subr.bf16.mxu0 0
        %687 = vmatpush1.bf16.msra.mxu0 0
        %688 = vmatprep.subr.bf16.mxu0 0
        %689 = vmatpush1.bf16.msra.mxu0 %v672
        %690 = vmatprep.subr.bf16.mxu0 0
        %691 = vmatpush2.bf16.msra.mxu0 0
        %692 = vmatprep.subr.bf16.mxu0 0
        %693 = vmatpush2.bf16.msra.mxu0 0
        %694 = vmatprep.subr.bf16.mxu0 0
        %695 = vmatpush2.bf16.msra.mxu0 0
        %696 = vmatprep.subr.bf16.mxu0 0
        %697 = vmatpush2.bf16.msra.mxu0 0
        %698 = vmatprep.subr.bf16.mxu0 0
        %699 = vmatpush2.bf16.msra.mxu0 0
        %700 = vmatprep.subr.bf16.mxu0 0
        %701 = vmatpush2.bf16.msra.mxu0 0
        %702 = vmatprep.subr.bf16.mxu0 0
        %703 = vmatpush2.bf16.msra.mxu0 0
        %704 = vmatprep.subr.bf16.mxu0 0
        %705 = vmatpush2.bf16.msra.mxu0 0
        %706 = vmatprep.mubr.bf16.mxu0 0
        %707 = vmatmul.mubr.bf16.gmra.mxu0 %v668
        %v708 = vpop.f32.mrf.mxu0
        %v709 = vadd.f32 0.0, %v708
        %v710 = vpop.f32.mrf.mxu0
        %v711 = vpop.f32.mrf.mxu0
        %v712 = vpop.f32.mrf.mxu0
        %713 = vdwg.mxu0
        %v714 = vpack.c.bf16 %v709, %v709
        %716 = vrot.lane.b32.xlu0 %v605, 120
        %v717 = vpop.permute.xlu0 %716
        %719 = vrot.lane.b32.xlu0 %v606, 120
        %v720 = vpop.permute.xlu0 %719
        %v722 = vsel %vm608, %v717, 0
        %v725 = vsel %vm608, %v720, 0
        %727 = vmatprep.subr.bf16.mxu0 0
        %728 = vmatpush1.bf16.xpose.msra.mxu0 0
        %729 = vmatprep.subr.bf16.mxu0 0
        %730 = vmatpush1.bf16.xpose.msra.mxu0 0
        %731 = vmatprep.subr.bf16.mxu0 0
        %732 = vmatpush1.bf16.xpose.msra.mxu0 0
        %733 = vmatprep.subr.bf16.mxu0 0
        %734 = vmatpush1.bf16.xpose.msra.mxu0 0
        %735 = vmatprep.subr.bf16.mxu0 0
        %736 = vmatpush1.bf16.xpose.msra.mxu0 0
        %737 = vmatprep.subr.bf16.mxu0 0
        %738 = vmatpush1.bf16.xpose.msra.mxu0 0
        %739 = vmatprep.subr.bf16.mxu0 0
        %740 = vmatpush1.bf16.xpose.msra.mxu0 0
        %741 = vmatprep.subr.bf16.mxu0 0
        %742 = vmatpush1.bf16.xpose.msra.mxu0 %v725
        %743 = vmatprep.subr.bf16.mxu0 0
        %744 = vmatpush2.bf16.xpose.msra.mxu0 0
        %745 = vmatprep.subr.bf16.mxu0 0
        %746 = vmatpush2.bf16.xpose.msra.mxu0 0
        %747 = vmatprep.subr.bf16.mxu0 0
        %748 = vmatpush2.bf16.xpose.msra.mxu0 0
        %749 = vmatprep.subr.bf16.mxu0 0
        %750 = vmatpush2.bf16.xpose.msra.mxu0 0
        %751 = vmatprep.subr.bf16.mxu0 0
        %752 = vmatpush2.bf16.xpose.msra.mxu0 0
        %753 = vmatprep.subr.bf16.mxu0 0
        %754 = vmatpush2.bf16.xpose.msra.mxu0 0
        %755 = vmatprep.subr.bf16.mxu0 0
        %756 = vmatpush2.bf16.xpose.msra.mxu0 0
        %757 = vmatprep.subr.bf16.mxu0 0
        %758 = vmatpush2.bf16.xpose.msra.mxu0 0
        %759 = vmatprep.mubr.bf16.mxu0 0
        %760 = vmatmul.mubr.bf16.gmra.mxu0 %v722
        %v761 = vpop.f32.mrf.mxu0
        %v762 = vadd.f32 0.0, %v761
        %v763 = vpop.f32.mrf.mxu0
        %v764 = vpop.f32.mrf.mxu0
        %v765 = vpop.f32.mrf.mxu0
        %766 = vdwg.mxu0
        %v767 = vsel %vm608, %v762, -inf
        %768 = vmax.xlane.f32.xlu0 %v767
        %v769 = vpop.xlane.xlu0 %768
        %v770 = vsub.f32 %v762, %v769
        %v771 = vmul.f32 %v770, 1.442695
        %v772 = vpow.pop %v771
        %v773 = vsel %vm608, %v772, 0.0
        %774 = vadd.xlane.f32.xlu0 %v773
        %v775 = vpop.xlane.xlu0 %774
        %v776 = vrcp.pop %v775
        %v777 = vmul.f32 %v772, %v776
        %v778 = vpack.c.bf16 %v777, %v777
        %780 = vrot.lane.b32.xlu0 %v607, 120
        %v781 = vpop.permute.xlu0 %780
        %v783 = vsel %vm608, %v778, 0
        %v786 = vsel %vm670, %v781, 0
        %788 = vmatprep.subr.bf16.mxu0 0
        %789 = vmatpush1.bf16.msra.mxu0 0
        %790 = vmatprep.subr.bf16.mxu0 0
        %791 = vmatpush1.bf16.msra.mxu0 0
        %792 = vmatprep.subr.bf16.mxu0 0
        %793 = vmatpush1.bf16.msra.mxu0 0
        %794 = vmatprep.subr.bf16.mxu0 0
        %795 = vmatpush1.bf16.msra.mxu0 0
        %796 = vmatprep.subr.bf16.mxu0 0
        %797 = vmatpush1.bf16.msra.mxu0 0
        %798 = vmatprep.subr.bf16.mxu0 0
        %799 = vmatpush1.bf16.msra.mxu0 0
        %800 = vmatprep.subr.bf16.mxu0 0
        %801 = vmatpush1.bf16.msra.mxu0 0
        %802 = vmatprep.subr.bf16.mxu0 0
        %803 = vmatpush1.bf16.msra.mxu0 %v786
        %804 = vmatprep.subr.bf16.mxu0 0
        %805 = vmatpush2.bf16.msra.mxu0 0
        %806 = vmatprep.subr.bf16.mxu0 0
        %807 = vmatpush2.bf16.msra.mxu0 0
        %808 = vmatprep.subr.bf16.mxu0 0
        %809 = vmatpush2.bf16.msra.mxu0 0
        %810 = vmatprep.subr.bf16.mxu0 0
        %811 = vmatpush2.bf16.msra.mxu0 0
        %812 = vmatprep.subr.bf16.mxu0 0
        %813 = vmatpush2.bf16.msra.mxu0 0
        %814 = vmatprep.subr.bf16.mxu0 0
        %815 = vmatpush2.bf16.msra.mxu0 0
        %816 = vmatprep.subr.bf16.mxu0 0
        %817 = vmatpush2.bf16.msra.mxu0 0
        %818 = vmatprep.subr.bf16.mxu0 0
        %819 = vmatpush2.bf16.msra.mxu0 0
        %820 = vmatprep.mubr.bf16.mxu0 0
        %821 = vmatmul.mubr.bf16.gmra.mxu0 %v783
        %v822 = vpop.f32.mrf.mxu0
        %v823 = vadd.f32 0.0, %v822
        %v824 = vpop.f32.mrf.mxu0
        %v825 = vpop.f32.mrf.mxu0
        %v826 = vpop.f32.mrf.mxu0
        %827 = vdwg.mxu0
        %v828 = vpack.c.bf16 %v823, %v823
        %v830 = vsel %vm608, %v828, 0
        %v833 = vsel %vm670, %v602, 0
        %835 = vmatprep.subr.bf16.mxu0 0
        %836 = vmatpush1.bf16.msra.mxu0 0
        %837 = vmatprep.subr.bf16.mxu0 0
        %838 = vmatpush1.bf16.msra.mxu0 0
        %839 = vmatprep.subr.bf16.mxu0 0
        %840 = vmatpush1.bf16.msra.mxu0 0
        %841 = vmatprep.subr.bf16.mxu0 0
        %842 = vmatpush1.bf16.msra.mxu0 0
        %843 = vmatprep.subr.bf16.mxu0 0
        %844 = vmatpush1.bf16.msra.mxu0 0
        %845 = vmatprep.subr.bf16.mxu0 0
        %846 = vmatpush1.bf16.msra.mxu0 0
        %847 = vmatprep.subr.bf16.mxu0 0
        %848 = vmatpush1.bf16.msra.mxu0 0
        %849 = vmatprep.subr.bf16.mxu0 0
        %850 = vmatpush1.bf16.msra.mxu0 %v833
        %851 = vmatprep.subr.bf16.mxu0 0
        %852 = vmatpush2.bf16.msra.mxu0 0
        %853 = vmatprep.subr.bf16.mxu0 0
        %854 = vmatpush2.bf16.msra.mxu0 0
        %855 = vmatprep.subr.bf16.mxu0 0
        %856 = vmatpush2.bf16.msra.mxu0 0
        %857 = vmatprep.subr.bf16.mxu0 0
        %858 = vmatpush2.bf16.msra.mxu0 0
        %859 = vmatprep.subr.bf16.mxu0 0
        %860 = vmatpush2.bf16.msra.mxu0 0
        %861 = vmatprep.subr.bf16.mxu0 0
        %862 = vmatpush2.bf16.msra.mxu0 0
        %863 = vmatprep.subr.bf16.mxu0 0
        %864 = vmatpush2.bf16.msra.mxu0 0
        %865 = vmatprep.subr.bf16.mxu0 0
        %866 = vmatpush2.bf16.msra.mxu0 0
        %867 = vmatprep.mubr.bf16.mxu0 0
        %868 = vmatmul.mubr.bf16.gmra.mxu0 %v830
        %v869 = vpop.f32.mrf.mxu0
        %v870 = vadd.f32 0.0, %v869
        %v871 = vpop.f32.mrf.mxu0
        %v872 = vpop.f32.mrf.mxu0
        %v873 = vpop.f32.mrf.mxu0
        %874 = vdwg.mxu0
        %v876 = vsel %vm608, %v714, 0
        %v879 = vsel %vm670, %v601, 0
        %881 = vmatprep.subr.bf16.mxu0 0
        %882 = vmatpush1.bf16.msra.mxu0 0
        %883 = vmatprep.subr.bf16.mxu0 0
        %884 = vmatpush1.bf16.msra.mxu0 0
        %885 = vmatprep.subr.bf16.mxu0 0
        %886 = vmatpush1.bf16.msra.mxu0 0
        %887 = vmatprep.subr.bf16.mxu0 0
        %888 = vmatpush1.bf16.msra.mxu0 0
        %889 = vmatprep.subr.bf16.mxu0 0
        %890 = vmatpush1.bf16.msra.mxu0 0
        %891 = vmatprep.subr.bf16.mxu0 0
        %892 = vmatpush1.bf16.msra.mxu0 0
        %893 = vmatprep.subr.bf16.mxu0 0
        %894 = vmatpush1.bf16.msra.mxu0 0
        %895 = vmatprep.subr.bf16.mxu0 0
        %896 = vmatpush1.bf16.msra.mxu0 %v879
        %897 = vmatprep.subr.bf16.mxu0 0
        %898 = vmatpush2.bf16.msra.mxu0 0
        %899 = vmatprep.subr.bf16.mxu0 0
        %900 = vmatpush2.bf16.msra.mxu0 0
        %901 = vmatprep.subr.bf16.mxu0 0
        %902 = vmatpush2.bf16.msra.mxu0 0
        %903 = vmatprep.subr.bf16.mxu0 0
        %904 = vmatpush2.bf16.msra.mxu0 0
        %905 = vmatprep.subr.bf16.mxu0 0
        %906 = vmatpush2.bf16.msra.mxu0 0
        %907 = vmatprep.subr.bf16.mxu0 0
        %908 = vmatpush2.bf16.msra.mxu0 0
        %909 = vmatprep.subr.bf16.mxu0 0
        %910 = vmatpush2.bf16.msra.mxu0 0
        %911 = vmatprep.subr.bf16.mxu0 0
        %912 = vmatpush2.bf16.msra.mxu0 0
        %913 = vmatprep.mubr.bf16.mxu0 0
        %914 = vmatmul.mubr.bf16.gmra.mxu0 %v876
        %v915 = vpop.f32.mrf.mxu0
        %v916 = vadd.f32 %v870, %v915
        %v917 = vpop.f32.mrf.mxu0
        %v918 = vpop.f32.mrf.mxu0
        %v919 = vpop.f32.mrf.mxu0
        %920 = vdwg.mxu0
        %921 = vrot.lane.b32.xlu0 %v605, 112
        %v922 = vpop.permute.xlu0 %921
        %923 = vrot.lane.b32.xlu0 %v606, 112
        %v924 = vpop.permute.xlu0 %923
        %v926 = vsel %vm608, %v922, 0
        %v929 = vsel %vm608, %v924, 0
        %931 = vmatprep.subr.bf16.mxu0 0
        %932 = vmatpush1.bf16.xpose.msra.mxu0 0
        %933 = vmatprep.subr.bf16.mxu0 0
        %934 = vmatpush1.bf16.xpose.msra.mxu0 0
        %935 = vmatprep.subr.bf16.mxu0 0
        %936 = vmatpush1.bf16.xpose.msra.mxu0 0
        %937 = vmatprep.subr.bf16.mxu0 0
        %938 = vmatpush1.bf16.xpose.msra.mxu0 0
        %939 = vmatprep.subr.bf16.mxu0 0
        %940 = vmatpush1.bf16.xpose.msra.mxu0 0
        %941 = vmatprep.subr.bf16.mxu0 0
        %942 = vmatpush1.bf16.xpose.msra.mxu0 0
        %943 = vmatprep.subr.bf16.mxu0 0
        %944 = vmatpush1.bf16.xpose.msra.mxu0 0
        %945 = vmatprep.subr.bf16.mxu0 0
        %946 = vmatpush1.bf16.xpose.msra.mxu0 %v929
        %947 = vmatprep.subr.bf16.mxu0 0
        %948 = vmatpush2.bf16.xpose.msra.mxu0 0
        %949 = vmatprep.subr.bf16.mxu0 0
        %950 = vmatpush2.bf16.xpose.msra.mxu0 0
        %951 = vmatprep.subr.bf16.mxu0 0
        %952 = vmatpush2.bf16.xpose.msra.mxu0 0
        %953 = vmatprep.subr.bf16.mxu0 0
        %954 = vmatpush2.bf16.xpose.msra.mxu0 0
        %955 = vmatprep.subr.bf16.mxu0 0
        %956 = vmatpush2.bf16.xpose.msra.mxu0 0
        %957 = vmatprep.subr.bf16.mxu0 0
        %958 = vmatpush2.bf16.xpose.msra.mxu0 0
        %959 = vmatprep.subr.bf16.mxu0 0
        %960 = vmatpush2.bf16.xpose.msra.mxu0 0
        %961 = vmatprep.subr.bf16.mxu0 0
        %962 = vmatpush2.bf16.xpose.msra.mxu0 0
        %963 = vmatprep.mubr.bf16.mxu0 0
        %964 = vmatmul.mubr.bf16.gmra.mxu0 %v926
        %v965 = vpop.f32.mrf.mxu0
        %v966 = vadd.f32 0.0, %v965
        %v967 = vpop.f32.mrf.mxu0
        %v968 = vpop.f32.mrf.mxu0
        %v969 = vpop.f32.mrf.mxu0
        %970 = vdwg.mxu0
        %v971 = vsel %vm608, %v966, -inf
        %972 = vmax.xlane.f32.xlu0 %v971
        %v973 = vpop.xlane.xlu0 %972
        %v974 = vsub.f32 %v966, %v973
        %v975 = vmul.f32 %v974, 1.442695
        %v976 = vpow.pop %v975
        %v977 = vsel %vm608, %v976, 0.0
        %978 = vadd.xlane.f32.xlu0 %v977
        %v979 = vpop.xlane.xlu0 %978
        %v980 = vrcp.pop %v979
        %v981 = vmul.f32 %v976, %v980
        %v982 = vpack.c.bf16 %v981, %v981
        %983 = vrot.lane.b32.xlu0 %v607, 112
        %v984 = vpop.permute.xlu0 %983
        %v986 = vsel %vm608, %v982, 0
        %v989 = vsel %vm670, %v984, 0
        %991 = vmatprep.subr.bf16.mxu0 0
        %992 = vmatpush1.bf16.msra.mxu0 0
        %993 = vmatprep.subr.bf16.mxu0 0
        %994 = vmatpush1.bf16.msra.mxu0 0
        %995 = vmatprep.subr.bf16.mxu0 0
        %996 = vmatpush1.bf16.msra.mxu0 0
        %997 = vmatprep.subr.bf16.mxu0 0
        %998 = vmatpush1.bf16.msra.mxu0 0
        %999 = vmatprep.subr.bf16.mxu0 0
        %1000 = vmatpush1.bf16.msra.mxu0 0
        %1001 = vmatprep.subr.bf16.mxu0 0
        %1002 = vmatpush1.bf16.msra.mxu0 0
        %1003 = vmatprep.subr.bf16.mxu0 0
        %1004 = vmatpush1.bf16.msra.mxu0 0
        %1005 = vmatprep.subr.bf16.mxu0 0
        %1006 = vmatpush1.bf16.msra.mxu0 %v989
        %1007 = vmatprep.subr.bf16.mxu0 0
        %1008 = vmatpush2.bf16.msra.mxu0 0
        %1009 = vmatprep.subr.bf16.mxu0 0
        %1010 = vmatpush2.bf16.msra.mxu0 0
        %1011 = vmatprep.subr.bf16.mxu0 0
        %1012 = vmatpush2.bf16.msra.mxu0 0
        %1013 = vmatprep.subr.bf16.mxu0 0
        %1014 = vmatpush2.bf16.msra.mxu0 0
        %1015 = vmatprep.subr.bf16.mxu0 0
        %1016 = vmatpush2.bf16.msra.mxu0 0
        %1017 = vmatprep.subr.bf16.mxu0 0
        %1018 = vmatpush2.bf16.msra.mxu0 0
        %1019 = vmatprep.subr.bf16.mxu0 0
        %1020 = vmatpush2.bf16.msra.mxu0 0
        %1021 = vmatprep.subr.bf16.mxu0 0
        %1022 = vmatpush2.bf16.msra.mxu0 0
        %1023 = vmatprep.mubr.bf16.mxu0 0
        %1024 = vmatmul.mubr.bf16.gmra.mxu0 %v986
        %v1025 = vpop.f32.mrf.mxu0
        %v1026 = vadd.f32 0.0, %v1025
        %v1027 = vpop.f32.mrf.mxu0
        %v1028 = vpop.f32.mrf.mxu0
        %v1029 = vpop.f32.mrf.mxu0
        %1030 = vdwg.mxu0
        %v1031 = vpack.c.bf16 %v1026, %v1026
        %v1033 = vsel %vm608, %v1031, 0
        %v1036 = vsel %vm670, %v603, 0
        %1038 = vmatprep.subr.bf16.mxu0 0
        %1039 = vmatpush1.bf16.msra.mxu0 0
        %1040 = vmatprep.subr.bf16.mxu0 0
        %1041 = vmatpush1.bf16.msra.mxu0 0
        %1042 = vmatprep.subr.bf16.mxu0 0
        %1043 = vmatpush1.bf16.msra.mxu0 0
        %1044 = vmatprep.subr.bf16.mxu0 0
        %1045 = vmatpush1.bf16.msra.mxu0 0
        %1046 = vmatprep.subr.bf16.mxu0 0
        %1047 = vmatpush1.bf16.msra.mxu0 0
        %1048 = vmatprep.subr.bf16.mxu0 0
        %1049 = vmatpush1.bf16.msra.mxu0 0
        %1050 = vmatprep.subr.bf16.mxu0 0
        %1051 = vmatpush1.bf16.msra.mxu0 0
        %1052 = vmatprep.subr.bf16.mxu0 0
        %1053 = vmatpush1.bf16.msra.mxu0 %v1036
        %1054 = vmatprep.subr.bf16.mxu0 0
        %1055 = vmatpush2.bf16.msra.mxu0 0
        %1056 = vmatprep.subr.bf16.mxu0 0
        %1057 = vmatpush2.bf16.msra.mxu0 0
        %1058 = vmatprep.subr.bf16.mxu0 0
        %1059 = vmatpush2.bf16.msra.mxu0 0
        %1060 = vmatprep.subr.bf16.mxu0 0
        %1061 = vmatpush2.bf16.msra.mxu0 0
        %1062 = vmatprep.subr.bf16.mxu0 0
        %1063 = vmatpush2.bf16.msra.mxu0 0
        %1064 = vmatprep.subr.bf16.mxu0 0
        %1065 = vmatpush2.bf16.msra.mxu0 0
        %1066 = vmatprep.subr.bf16.mxu0 0
        %1067 = vmatpush2.bf16.msra.mxu0 0
        %1068 = vmatprep.subr.bf16.mxu0 0
        %1069 = vmatpush2.bf16.msra.mxu0 0
        %1070 = vmatprep.mubr.bf16.mxu0 0
        %1071 = vmatmul.mubr.bf16.gmra.mxu0 %v1033
        %v1072 = vpop.f32.mrf.mxu0
        %v1073 = vadd.f32 0.0, %v1072
        %v1074 = vpop.f32.mrf.mxu0
        %v1075 = vpop.f32.mrf.mxu0
        %v1076 = vpop.f32.mrf.mxu0
        %1077 = vdwg.mxu0
        %v1078 = vadd.f32 %v916, %v1073
        %1079 = vrot.lane.b32.xlu0 %v605, 104
        %v1080 = vpop.permute.xlu0 %1079
        %1081 = vrot.lane.b32.xlu0 %v606, 104
        %v1082 = vpop.permute.xlu0 %1081
        %v1084 = vsel %vm608, %v1080, 0
        %v1087 = vsel %vm608, %v1082, 0
        %1089 = vmatprep.subr.bf16.mxu0 0
        %1090 = vmatpush1.bf16.xpose.msra.mxu0 0
        %1091 = vmatprep.subr.bf16.mxu0 0
        %1092 = vmatpush1.bf16.xpose.msra.mxu0 0
        %1093 = vmatprep.subr.bf16.mxu0 0
        %1094 = vmatpush1.bf16.xpose.msra.mxu0 0
        %1095 = vmatprep.subr.bf16.mxu0 0
        %1096 = vmatpush1.bf16.xpose.msra.mxu0 0
        %1097 = vmatprep.subr.bf16.mxu0 0
        %1098 = vmatpush1.bf16.xpose.msra.mxu0 0
        %1099 = vmatprep.subr.bf16.mxu0 0
        %1100 = vmatpush1.bf16.xpose.msra.mxu0 0
        %1101 = vmatprep.subr.bf16.mxu0 0
        %1102 = vmatpush1.bf16.xpose.msra.mxu0 0
        %1103 = vmatprep.subr.bf16.mxu0 0
        %1104 = vmatpush1.bf16.xpose.msra.mxu0 %v1087
        %1105 = vmatprep.subr.bf16.mxu0 0
        %1106 = vmatpush2.bf16.xpose.msra.mxu0 0
        %1107 = vmatprep.subr.bf16.mxu0 0
        %1108 = vmatpush2.bf16.xpose.msra.mxu0 0
        %1109 = vmatprep.subr.bf16.mxu0 0
        %1110 = vmatpush2.bf16.xpose.msra.mxu0 0
        %1111 = vmatprep.subr.bf16.mxu0 0
        %1112 = vmatpush2.bf16.xpose.msra.mxu0 0
        %1113 = vmatprep.subr.bf16.mxu0 0
        %1114 = vmatpush2.bf16.xpose.msra.mxu0 0
        %1115 = vmatprep.subr.bf16.mxu0 0
        %1116 = vmatpush2.bf16.xpose.msra.mxu0 0
        %1117 = vmatprep.subr.bf16.mxu0 0
        %1118 = vmatpush2.bf16.xpose.msra.mxu0 0
        %1119 = vmatprep.subr.bf16.mxu0 0
        %1120 = vmatpush2.bf16.xpose.msra.mxu0 0
        %1121 = vmatprep.mubr.bf16.mxu0 0
        %1122 = vmatmul.mubr.bf16.gmra.mxu0 %v1084
        %v1123 = vpop.f32.mrf.mxu0
        %v1124 = vadd.f32 0.0, %v1123
        %v1125 = vpop.f32.mrf.mxu0
        %v1126 = vpop.f32.mrf.mxu0
        %v1127 = vpop.f32.mrf.mxu0
        %1128 = vdwg.mxu0
        %v1129 = vsel %vm608, %v1124, -inf
        %1130 = vmax.xlane.f32.xlu0 %v1129
        %v1131 = vpop.xlane.xlu0 %1130
        %v1132 = vsub.f32 %v1124, %v1131
        %v1133 = vmul.f32 %v1132, 1.442695
        %v1134 = vpow.pop %v1133
        %v1135 = vsel %vm608, %v1134, 0.0
        %1136 = vadd.xlane.f32.xlu0 %v1135
        %v1137 = vpop.xlane.xlu0 %1136
        %v1138 = vrcp.pop %v1137
        %v1139 = vmul.f32 %v1134, %v1138
        %v1140 = vpack.c.bf16 %v1139, %v1139
        %1141 = vrot.lane.b32.xlu0 %v607, 104
        %v1142 = vpop.permute.xlu0 %1141
        %v1144 = vsel %vm608, %v1140, 0
        %v1147 = vsel %vm670, %v1142, 0
        %1149 = vmatprep.subr.bf16.mxu0 0
        %1150 = vmatpush1.bf16.msra.mxu0 0
        %1151 = vmatprep.subr.bf16.mxu0 0
        %1152 = vmatpush1.bf16.msra.mxu0 0
        %1153 = vmatprep.subr.bf16.mxu0 0
        %1154 = vmatpush1.bf16.msra.mxu0 0
        %1155 = vmatprep.subr.bf16.mxu0 0
        %1156 = vmatpush1.bf16.msra.mxu0 0
        %1157 = vmatprep.subr.bf16.mxu0 0
        %1158 = vmatpush1.bf16.msra.mxu0 0
        %1159 = vmatprep.subr.bf16.mxu0 0
        %1160 = vmatpush1.bf16.msra.mxu0 0
        %1161 = vmatprep.subr.bf16.mxu0 0
        %1162 = vmatpush1.bf16.msra.mxu0 0
        %1163 = vmatprep.subr.bf16.mxu0 0
        %1164 = vmatpush1.bf16.msra.mxu0 %v1147
        %1165 = vmatprep.subr.bf16.mxu0 0
        %1166 = vmatpush2.bf16.msra.mxu0 0
        %1167 = vmatprep.subr.bf16.mxu0 0
        %1168 = vmatpush2.bf16.msra.mxu0 0
        %1169 = vmatprep.subr.bf16.mxu0 0
        %1170 = vmatpush2.bf16.msra.mxu0 0
        %1171 = vmatprep.subr.bf16.mxu0 0
        %1172 = vmatpush2.bf16.msra.mxu0 0
        %1173 = vmatprep.subr.bf16.mxu0 0
        %1174 = vmatpush2.bf16.msra.mxu0 0
        %1175 = vmatprep.subr.bf16.mxu0 0
        %1176 = vmatpush2.bf16.msra.mxu0 0
        %1177 = vmatprep.subr.bf16.mxu0 0
        %1178 = vmatpush2.bf16.msra.mxu0 0
        %1179 = vmatprep.subr.bf16.mxu0 0
        %1180 = vmatpush2.bf16.msra.mxu0 0
        %1181 = vmatprep.mubr.bf16.mxu0 0
        %1182 = vmatmul.mubr.bf16.gmra.mxu0 %v1144
        %v1183 = vpop.f32.mrf.mxu0
        %v1184 = vadd.f32 0.0, %v1183
        %v1185 = vpop.f32.mrf.mxu0
        %v1186 = vpop.f32.mrf.mxu0
        %v1187 = vpop.f32.mrf.mxu0
        %1188 = vdwg.mxu0
        %v1189 = vpack.c.bf16 %v1184, %v1184
        %v1191 = vsel %vm608, %v1189, 0
        %v1194 = vsel %vm670, %v604, 0
        %1196 = vmatprep.subr.bf16.mxu0 0
        %1197 = vmatpush1.bf16.msra.mxu0 0
        %1198 = vmatprep.subr.bf16.mxu0 0
        %1199 = vmatpush1.bf16.msra.mxu0 0
        %1200 = vmatprep.subr.bf16.mxu0 0
        %1201 = vmatpush1.bf16.msra.mxu0 0
        %1202 = vmatprep.subr.bf16.mxu0 0
        %1203 = vmatpush1.bf16.msra.mxu0 0
        %1204 = vmatprep.subr.bf16.mxu0 0
        %1205 = vmatpush1.bf16.msra.mxu0 0
        %1206 = vmatprep.subr.bf16.mxu0 0
        %1207 = vmatpush1.bf16.msra.mxu0 0
        %1208 = vmatprep.subr.bf16.mxu0 0
        %1209 = vmatpush1.bf16.msra.mxu0 0
        %1210 = vmatprep.subr.bf16.mxu0 0
        %1211 = vmatpush1.bf16.msra.mxu0 %v1194
        %1212 = vmatprep.subr.bf16.mxu0 0
        %1213 = vmatpush2.bf16.msra.mxu0 0
        %1214 = vmatprep.subr.bf16.mxu0 0
        %1215 = vmatpush2.bf16.msra.mxu0 0
        %1216 = vmatprep.subr.bf16.mxu0 0
        %1217 = vmatpush2.bf16.msra.mxu0 0
        %1218 = vmatprep.subr.bf16.mxu0 0
        %1219 = vmatpush2.bf16.msra.mxu0 0
        %1220 = vmatprep.subr.bf16.mxu0 0
        %1221 = vmatpush2.bf16.msra.mxu0 0
        %1222 = vmatprep.subr.bf16.mxu0 0
        %1223 = vmatpush2.bf16.msra.mxu0 0
        %1224 = vmatprep.subr.bf16.mxu0 0
        %1225 = vmatpush2.bf16.msra.mxu0 0
        %1226 = vmatprep.subr.bf16.mxu0 0
        %1227 = vmatpush2.bf16.msra.mxu0 0
        %1228 = vmatprep.mubr.bf16.mxu0 0
        %1229 = vmatmul.mubr.bf16.gmra.mxu0 %v1191
        %v1230 = vpop.f32.mrf.mxu0
        %v1231 = vadd.f32 0.0, %v1230
        %v1232 = vpop.f32.mrf.mxu0
        %v1233 = vpop.f32.mrf.mxu0
        %v1234 = vpop.f32.mrf.mxu0
        %1235 = vdwg.mxu0
        %v1236 = vadd.f32 %v1078, %v1231
        %v1237 = vld [vmem:[%s8] sm:$0x1]
        %v1239 = vlaneseq
        %v1240 = vshrl.u32 %v1239, 7
        %v1241 = vsub.s32 0, %v1240
        %v1242 = vrot.slane %v1237, %v1241
        %v1244 = vadd.f32 %v1236, %v1242
        %1245 = vst.msk [vmem:[%s405] sm:$0xff] %vm431, %v1244
        %s1246 = sand.u32 %s230, 1
        %s1247 = scalar_lea.sflag [#allocation4], %s1246
        %s1248 = sand.u32 %s230, 1
        %s1249 = smul.addr %s1248, 8
        %s1250 = scalar_lea.vmem [#allocation11], %s1249
        // Predicated region
        $region77: #{tpu_custom_call.1} parent=55 // pred_check
          %p1251 = pneg %p240
        $region78: #{tpu_custom_call.1} parent=55 // pred_check_branch
          %1253 = sbr.rel (%p1251) target = $region80
        $region79: #{tpu_custom_call.1} parent=55 // pred_region
          %s1255 = ssub.s32 128, 128
          %1256 = vsyncadd %s1247, %s1255
          %s1257 = smul.addr %s28, 128
          %s1258 = scalar_lea.hbm %s9, %s1257
          %s1260 = sshll.u32 %s1250, 4
          %s1261 = int_to_ptr.vmem [resolvable:$true] %s1260
          %1263 = dma.vmem_to_hbm [thread:$0]  %s1261, 128, %s1258, %s1247
        $region80: #{tpu_custom_call.1} parent=55 // pred_fallthru
          _
      $region56: #{tpu_custom_call.1} parent=5 // pred_fallthru
        _
      %p1264 = scmp.le.s32.totalorder 2, %s23
      // Predicated region
      $region81: #{tpu_custom_call.1} parent=5 // pred_check
        %p1265 = pneg %p1264
      $region82: #{tpu_custom_call.1} parent=5 // pred_check_branch
        %1267 = sbr.rel (%p1265) target = $region84
      $region83: #{tpu_custom_call.1} parent=5 // pred_region
        %s1268 = ssub.s32 %s23, 2
        // Predicated region
        $region85: #{tpu_custom_call.1} parent=83 // pred_check
          %p1269 = pneg %p246
        $region86: #{tpu_custom_call.1} parent=83 // pred_check_branch
          %1271 = sbr.rel (%p1269) target = $region88
        $region87: #{tpu_custom_call.1} parent=83 // pred_region
          %s1272 = sand.u32 %s231, 1
          %s1273 = scalar_lea.sflag [#allocation4], %s1272
          %s1274 = sand.u32 %s231, 1
          %s1275 = smul.addr %s1274, 8
          %s1276 = scalar_lea.vmem [#allocation11], %s1275
          %1277 = dma.done %s1273, 128
        $region88: #{tpu_custom_call.1} parent=83 // pred_fallthru
          _
      $region84: #{tpu_custom_call.1} parent=5 // pred_fallthru
        _
    $region6: #{tpu_custom_call.1} parent=1 // loop_footer
      %s27 = sadd.s32 1, %s23
    $region7: #{tpu_custom_call.1} parent=1 // loop_footer_branch
      %22 = sbr.rel target = $region3
    $region8: #{tpu_custom_call.1} parent=1 // loop_exit
      _
    %1278 = vsyncpa [#allocation3], 1
    %s1279 = scalar_lea.sflag [#allocation3], 1
    %1280 = vsyncpa %s1279, 1
    %1281 = vsyncpa [#allocation6], 1
    %1282 = vsyncpa [#allocation9], 1
    %1283 = vsyncpa [#allocation4], 1
    %s1284 = scalar_lea.sflag [#allocation4], 1
    %1285 = vsyncpa %s1284, 1

</llo_original>
